<compile_context>
chip_gen: v6e
topology: v6e:2x2x1
jax: 0.10.0
libtpu: 0.0.40
codegen_flags: <defaults>
</compile_context>

<pallas_src>
from functools import partial

import jax
import jax.numpy as jnp
from jax.experimental import pallas as pl
from jax.experimental.pallas import tpu as pltpu


# ------------------------------ small helpers --------------------------------

_VMEM_LIMIT = None


def _vmem_limit_bytes():
    """~physical VMEM minus headroom: ~96 MiB on 128-MiB chips (v5e/v6e), 32 MiB on v7x."""
    global _VMEM_LIMIT
    if _VMEM_LIMIT is None:
        try:
            cap = int(pltpu.get_tpu_info().vmem_capacity_bytes)
        except Exception:
            cap = 64 * 1024 * 1024
        _VMEM_LIMIT = int(min(max(cap - 32 * 1024 * 1024, 32 * 1024 * 1024),
                              112 * 1024 * 1024))
    return _VMEM_LIMIT


_BUFFERED1_OK = None


def _probe_copy_kernel(x_ref, o_ref):
    o_ref[...] = x_ref[...]


def _single_buffer_supported():
    """Probe once whether pipeline_mode=pl.Buffered(1) works on this jax/libtpu build."""
    global _BUFFERED1_OK
    if _BUFFERED1_OK is None:
        try:
            spec = pl.BlockSpec((8, 128), lambda i: (0, 0),
                                pipeline_mode=pl.Buffered(1))
            y = pl.pallas_call(
                _probe_copy_kernel,
                out_shape=jax.ShapeDtypeStruct((8, 128), jnp.float32),
                grid=(1,),
                in_specs=[spec],
                out_specs=pl.BlockSpec((8, 128), lambda i: (0, 0)),
            )(jnp.zeros((8, 128), jnp.float32))
            jax.block_until_ready(y)
            _BUFFERED1_OK = True
        except Exception:
            _BUFFERED1_OK = False
    return _BUFFERED1_OK


def _const_spec(shape):
    """Grid-invariant (weight/bias) block: VMEM-resident, single-buffered when supported."""
    index_map = lambda *_: (0,) * len(shape)
    if _single_buffer_supported():
        return pl.BlockSpec(shape, index_map, pipeline_mode=pl.Buffered(1))
    return pl.BlockSpec(shape, index_map)


def _pick_row_tile(m, t_max):
    """Largest row tile dividing m that is a legal second-minor block (mult. of 8 or full)."""
    if m <= t_max:
        return m
    best = None
    for t in range(8, t_max + 1, 8):
        if m % t == 0:
            best = t
    return best if best is not None else m


# ---------- fused in_proj + MHA + out_proj + residual + LayerNorm ------------

def _attn_block_kernel(x_ref, wqkv_ref, bqkv_ref, wo_ref, bo_ref, g_ref, b_ref,
                       o_ref, *, nhead, eps):
    """One batch element: qkv projection, multi-head attention, out_proj, residual, LN.
    Everything stays in VMEM; MXU operands keep their native dtype (bf16 on bf16 models)
    with f32 accumulation via preferred_element_type."""
    L, E = x_ref.shape
    Dh = E // nhead
    cdt = x_ref.dtype                                      # dtype fed to the MXU

    x = x_ref[...]
    # Fused qkv projection (q columns pre-scaled by Dh**-0.5 in prepare_params).
    qkv = jnp.dot(x, wqkv_ref[...], preferred_element_type=jnp.float32)
    qkv = qkv + bqkv_ref[...].astype(jnp.float32)          # (L, 3E) f32

    # Head-major (nhead, L, Dh) operands; a single batched einsum per stage keeps per-head
    # temporaries bounded (no unrolled per-head matmul chain / masked scratch scatters).
    q = jnp.stack([qkv[:, h * Dh:(h + 1) * Dh] for h in range(nhead)], axis=0)
    k = jnp.stack([qkv[:, E + h * Dh:E + (h + 1) * Dh] for h in range(nhead)], axis=0)
    v = jnp.stack([qkv[:, 2 * E + h * Dh:2 * E + (h + 1) * Dh] for h in range(nhead)], axis=0)
    q, k, v = q.astype(cdt), k.astype(cdt), v.astype(cdt)

    # scores: contract Dh (no explicit K transpose), batched over heads -> (H, L, L), f32
    s = jnp.einsum("hld,hmd->hlm", q, k, preferred_element_type=jnp.float32)
    s = s - jnp.max(s, axis=-1, keepdims=True)
    p = jnp.exp(s)
    # exact reciprocal (it sits on the EUP slot either way; approx=True lost accuracy for free)
    p = p * pl.reciprocal(jnp.sum(p, axis=-1, keepdims=True), approx=False)

    # P @ V with probabilities cast to the value dtype before hitting the MXU -> (H, L, Dh)
    a = jnp.einsum("hlm,hmd->hld", p.astype(cdt), v, preferred_element_type=jnp.float32)
    attn = jnp.concatenate([a[h] for h in range(nhead)], axis=-1)      # (L, E) merged heads

    # out_proj + residual + LayerNorm, all in VMEM (no HBM round-trip of the attention output).
    y = jnp.dot(attn.astype(cdt), wo_ref[...], preferred_element_type=jnp.float32)
    y = y + bo_ref[...].astype(jnp.float32)
    xr = x.astype(jnp.float32) + y
    mean = jnp.mean(xr, axis=-1, keepdims=True)
    var = jnp.mean((xr - mean) ** 2, axis=-1, keepdims=True)
    xh = (xr - mean) * jax.lax.rsqrt(var + eps)
    o_ref[...] = (xh * g_ref[...].astype(jnp.float32)
                  + b_ref[...].astype(jnp.float32)).astype(o_ref.dtype)


def attn_block(x2d, prep, *, nhead, seq_len, eps=1e-5):
    """x2d: (N*L, E) batch-major rows.  Returns LayerNorm(x + out_proj(MHA(x)))."""
    M, E = x2d.shape
    L = seq_len
    N = M // L
    assert M == N * L and E % nhead == 0
    # NOTE: L should be a multiple of 8 (sublane) unless N == 1 (block == full extent).
    threeE = 3 * E

    return pl.pallas_call(
        partial(_attn_block_kernel, nhead=nhead, eps=eps),
        out_shape=jax.ShapeDtypeStruct((M, E), x2d.dtype),
        grid=(N,),
        in_specs=[
            pl.BlockSpec((L, E), lambda n: (n, 0)),   # per-batch-element activations
            _const_spec((E, threeE)),                 # W_qkv   (q scale folded in)
            _const_spec((1, threeE)),                 # b_qkv
            _const_spec((E, E)),                      # W_out
            _const_spec((1, E)),                      # b_out
            _const_spec((1, E)),                      # LN gamma
            _const_spec((1, E)),                      # LN beta
        ],
        out_specs=pl.BlockSpec((L, E), lambda n: (n, 0)),
        compiler_params=pltpu.CompilerParams(
            dimension_semantics=("parallel",),
            vmem_limit_bytes=_vmem_limit_bytes()),
    )(x2d, prep["wqkv"], prep["bqkv"], prep["wo"], prep["bo"],
      prep["ln_g"], prep["ln_b"])


# ---------------- fused FFN (linear1+ReLU+linear2) + residual + LN -----------

def _ffn_block_kernel(x_ref, w1_ref, b1_ref, w2_ref, b2_ref, g_ref, b_ref, o_ref, *, eps):
    """One row tile: linear1 + ReLU + linear2 + residual + LayerNorm; the (tm, dim_ff)
    hidden activation never leaves VMEM.  Matmul operands stay in their native dtype."""
    cdt = x_ref.dtype
    x = x_ref[...]
    h = jnp.dot(x, w1_ref[...], preferred_element_type=jnp.float32)
    h = jnp.maximum(h + b1_ref[...].astype(jnp.float32), 0.0)
    ff = jnp.dot(h.astype(cdt), w2_ref[...], preferred_element_type=jnp.float32)
    ff = ff + b2_ref[...].astype(jnp.float32)
    xr = x.astype(jnp.float32) + ff
    mean = jnp.mean(xr, axis=-1, keepdims=True)
    var = jnp.mean((xr - mean) ** 2, axis=-1, keepdims=True)
    xh = (xr - mean) * jax.lax.rsqrt(var + eps)
    o_ref[...] = (xh * g_ref[...].astype(jnp.float32)
                  + b_ref[...].astype(jnp.float32)).astype(o_ref.dtype)


def ffn_block(x, prep, *, eps=1e-5, row_tile=512):
    """x: (M, E).  Returns LayerNorm(x + linear2(relu(linear1(x))))."""
    M, E = x.shape
    F = prep["w1"].shape[1]
    tm = _pick_row_tile(M, row_tile)
    # TODO(synk): K-tile dim_feedforward (grid axis over F with an accumulator) once E*F no
    #             longer fits VMEM even single-buffered in bf16.
    return pl.pallas_call(
        partial(_ffn_block_kernel, eps=eps),
        out_shape=jax.ShapeDtypeStruct((M, E), x.dtype),
        grid=(M // tm,),
        in_specs=[
            pl.BlockSpec((tm, E), lambda i: (i, 0)),
            _const_spec((E, F)),                      # W1
            _const_spec((1, F)),                      # b1
            _const_spec((F, E)),                      # W2
            _const_spec((1, E)),                      # b2
            _const_spec((1, E)),                      # LN gamma
            _const_spec((1, E)),                      # LN beta
        ],
        out_specs=pl.BlockSpec((tm, E), lambda i: (i, 0)),
        compiler_params=pltpu.CompilerParams(
            dimension_semantics=("parallel",),
            vmem_limit_bytes=_vmem_limit_bytes()),
    )(x, prep["w1"], prep["b1"], prep["w2"], prep["b2"], prep["ln_g"], prep["ln_b"])


# ------------------------- one-time weight preparation ------------------------

def prepare_params(params, nhead, compute_dtype=None):
    """Do ONCE and reuse across forward calls (hoists per-call weight copies off the HBM path):
      * transpose every weight into (in, out) layout,
      * fold the q scaling (Dh**-0.5) into the qkv projection weight/bias,
      * reshape biases / LN params into (1, dim) rows,
      * optionally cast matmul weights to `compute_dtype` (e.g. bf16) so the MXU sees native
        low-precision operands; biases / LN params stay f32 (they are added in f32 anyway).
    """
    E = params["out_proj_w"].shape[0]
    assert E % nhead == 0
    scale = (E // nhead) ** -0.5
    F = params["lin1_w"].shape[0]

    wqkv = jnp.transpose(params["in_proj_w"])                    # (E, 3E)
    wqkv = wqkv.at[:, :E].multiply(scale)
    bqkv = params["in_proj_b"].at[:E].multiply(scale)

    prep = {
        "wqkv": wqkv,
        "bqkv": bqkv.reshape(1, 3 * E).astype(jnp.float32),
        "wo":   jnp.transpose(params["out_proj_w"]),             # (E, E)
        "bo":   params["out_proj_b"].reshape(1, E).astype(jnp.float32),
        "w1":   jnp.transpose(params["lin1_w"]),                 # (E, F)
        "b1":   params["lin1_b"].reshape(1, F).astype(jnp.float32),
        "w2":   jnp.transpose(params["lin2_w"]),                 # (F, E)
        "b2":   params["lin2_b"].reshape(1, E).astype(jnp.float32),
        "ln_g": params["ln_g"].reshape(1, E).astype(jnp.float32),
        "ln_b": params["ln_b"].reshape(1, E).astype(jnp.float32),
    }
    if compute_dtype is not None:
        for key in ("wqkv", "wo", "w1", "w2"):
            prep[key] = prep[key].astype(compute_dtype)
    return prep


# ----------------------------- forward wrapper -------------------------------

def trans_encoder_layer_forward(src, prep, nhead, *, eps=1e-5, ffn_row_tile=512):
    """src: (L, N, E) -> (L, N, E).  `prep` comes from prepare_params (weights already
    transposed / scaled / cast).  Dropouts are identity (eval mode)."""
    L, N, E = src.shape
    cdt = prep["wqkv"].dtype
    # Batch-major rows so each batch element's L rows form one contiguous block.
    # TODO(synk): accept batch-first (N, L, E) input (or 3-D BlockSpecs over src) to drop
    #             these two host-side layout copies of the activations.
    x2d = jnp.transpose(src, (1, 0, 2)).reshape(N * L, E).astype(cdt)
    x = attn_block(x2d, prep, nhead=nhead, seq_len=L, eps=eps)
    x = ffn_block(x, prep, eps=eps, row_tile=ffn_row_tile)
    return x.reshape(N, L, E).transpose(1, 0, 2)


# ----------------------------- pure-JAX reference -----------------------------

def reference_forward(src, params, nhead):
    L, N, E = src.shape
    Dh = E // nhead
    x = src.reshape(L * N, E)
    qkv = x @ params["in_proj_w"].T + params["in_proj_b"]
    q, k, v = qkv[:, :E], qkv[:, E:2 * E], qkv[:, 2 * E:]
    q = q * (Dh ** -0.5)
    sh = lambda t: t.reshape(L, N * nhead, Dh).transpose(1, 0, 2)
    q, k, v = sh(q), sh(k), sh(v)
    s = jnp.einsum("bld,bmd->blm", q, k)
    p = jax.nn.softmax(s, axis=-1)
    a = jnp.einsum("blm,bmd->bld", p, v).transpose(1, 0, 2).reshape(L * N, E)
    a = a @ params["out_proj_w"].T + params["out_proj_b"]

    def ln(t):
        m = t.mean(-1, keepdims=True)
        var = ((t - m) ** 2).mean(-1, keepdims=True)
        return (t - m) / jnp.sqrt(var + 1e-5) * params["ln_g"] + params["ln_b"]

    x = ln(x + a)
    h = jnp.maximum(x @ params["lin1_w"].T + params["lin1_b"], 0.0)
    ff = h @ params["lin2_w"].T + params["lin2_b"]
    x = ln(x + ff)
    return x.reshape(L, N, E)


# ----------------------------------- main -------------------------------------

if __name__ == "__main__":
    L, N, E = 8, 2, 32          # seq=8, batch=2, d_model=32
    nhead = 4
    dim_feedforward = 64

    key = jax.random.PRNGKey(0)
    keys = jax.random.split(key, 12)
    s = 0.1
    params = {
        "in_proj_w":  s * jax.random.normal(keys[0], (3 * E, E), jnp.float32),
        "in_proj_b":  s * jax.random.normal(keys[1], (3 * E,), jnp.float32),
        "out_proj_w": s * jax.random.normal(keys[2], (E, E), jnp.float32),
        "out_proj_b": s * jax.random.normal(keys[3], (E,), jnp.float32),
        "lin1_w":     s * jax.random.normal(keys[4], (dim_feedforward, E), jnp.float32),
        "lin1_b":     s * jax.random.normal(keys[5], (dim_feedforward,), jnp.float32),
        "lin2_w":     s * jax.random.normal(keys[6], (E, dim_feedforward), jnp.float32),
        "lin2_b":     s * jax.random.normal(keys[7], (E,), jnp.float32),
        "ln_g":       jnp.ones((E,), jnp.float32),
        "ln_b":       jnp.zeros((E,), jnp.float32),
    }
    src = jax.random.normal(keys[8], (L, N, E), jnp.float32)

    _single_buffer_supported()   # probe Buffered(1) support once, up front

    fwd = jax.jit(partial(trans_encoder_layer_forward, nhead=nhead))
    ref = reference_forward(src, params, nhead)

    # f32 path: weights prepared once (transposes + q-scale fold hoisted out of the forward).
    prep_f32 = prepare_params(params, nhead)
    out = jax.block_until_ready(fwd(src, prep_f32))
    assert out.shape == (L, N, E)
    assert jnp.allclose(out, ref, atol=2e-3, rtol=2e-3), "f32 mismatch vs reference"

    # bf16 path: native bf16 MXU operands with f32 accumulation (loose-tolerance smoke test).
    prep_bf16 = prepare_params(params, nhead, compute_dtype=jnp.bfloat16)
    out16 = jax.block_until_ready(fwd(src.astype(jnp.bfloat16), prep_bf16))
    assert out16.dtype == jnp.bfloat16 and out16.shape == (L, N, E)
    assert bool(jnp.isfinite(out16.astype(jnp.float32)).all())
    assert jnp.allclose(out16.astype(jnp.float32), ref, atol=1e-1, rtol=1e-1), "bf16 mismatch"

    print("KERNEL_OK")
</pallas_src>

<mosaic_0001>
module attributes {stable_mosaic.version = 11 : i64} {
  func.func @_probe_copy_kernel(%arg0: i32, %arg1: memref<8x128xf32, #tpu.memory_space<vmem>>, %arg2: memref<8x128xf32, #tpu.memory_space<vmem>>) attributes {dimension_semantics = [#tpu.dimension_semantics<arbitrary>], iteration_bounds = array<i64: 1>, scalar_prefetch = 0 : i64, scratch_operands = 0 : i64, tpu.core_type = #tpu.core_type<tc>, window_params = [{pipeline_mode = #tpu.pipeline_mode<synchronous>, transform_indices = @transform_0, window_bounds = array<i64: 8, 128>}, {pipeline_mode = #tpu.pipeline_mode<synchronous>, transform_indices = @transform_1, window_bounds = array<i64: 8, 128>}]} {
    %c0 = arith.constant 0 : index
    %c0_0 = arith.constant 0 : index
    %0 = vector.load %arg1[%c0, %c0_0] : memref<8x128xf32, #tpu.memory_space<vmem>>, vector<8x128xf32>
    %c0_1 = arith.constant 0 : index
    %c0_2 = arith.constant 0 : index
    %1 = vector.load %arg2[%c0_1, %c0_2] : memref<8x128xf32, #tpu.memory_space<vmem>>, vector<8x128xf32>
    tpu.vector_store %arg2[%c0_1, %c0_2], %0 {strides = array<i32>} : memref<8x128xf32, #tpu.memory_space<vmem>>, vector<8x128xf32>,
    return
  }
  func.func @transform_0(%arg0: i32) -> (i32, i32) {
    %c0_i32 = arith.constant 0 : i32
    %c0_i32_0 = arith.constant 0 : i32
    %c0_i32_1 = arith.constant 0 : i32
    return %c0_i32, %c0_i32_0 : i32, i32
  }
  func.func @transform_1(%arg0: i32) -> (i32, i32) {
    %c0_i32 = arith.constant 0 : i32
    %c0_i32_0 = arith.constant 0 : i32
    %c0_i32_1 = arith.constant 0 : i32
    return %c0_i32, %c0_i32_0 : i32, i32
  }
}

module attributes {stable_mosaic.version = 11 : i64} {
  func.func @_ffn_block_kernel(%arg0: i32, %arg1: memref<16x32xf32, #tpu.memory_space<vmem>>, %arg2: memref<32x64xf32, #tpu.memory_space<vmem>>, %arg3: memref<1x64xf32, #tpu.memory_space<vmem>>, %arg4: memref<64x32xf32, #tpu.memory_space<vmem>>, %arg5: memref<1x32xf32, #tpu.memory_space<vmem>>, %arg6: memref<1x32xf32, #tpu.memory_space<vmem>>, %arg7: memref<1x32xf32, #tpu.memory_space<vmem>>, %arg8: memref<16x32xf32, #tpu.memory_space<vmem>>) attributes {dimension_semantics = [#tpu.dimension_semantics<parallel>], iteration_bounds = array<i64: 1>, scalar_prefetch = 0 : i64, scratch_operands = 0 : i64, tpu.core_type = #tpu.core_type<tc>, window_params = [{transform_indices = @transform_0, window_bounds = array<i64: 16, 32>}, {pipeline_mode = #tpu.pipeline_mode<synchronous>, transform_indices = @transform_1, window_bounds = array<i64: 32, 64>}, {pipeline_mode = #tpu.pipeline_mode<synchronous>, transform_indices = @transform_2, window_bounds = array<i64: 1, 64>}, {pipeline_mode = #tpu.pipeline_mode<synchronous>, transform_indices = @transform_3, window_bounds = array<i64: 64, 32>}, {pipeline_mode = #tpu.pipeline_mode<synchronous>, transform_indices = @transform_4, window_bounds = array<i64: 1, 32>}, {pipeline_mode = #tpu.pipeline_mode<synchronous>, transform_indices = @transform_5, window_bounds = array<i64: 1, 32>}, {pipeline_mode = #tpu.pipeline_mode<synchronous>, transform_indices = @transform_6, window_bounds = array<i64: 1, 32>}, {transform_indices = @transform_7, window_bounds = array<i64: 16, 32>}]} {
    %c0 = arith.constant 0 : index
    %c0_0 = arith.constant 0 : index
    %0 = vector.load %arg1[%c0, %c0_0] : memref<16x32xf32, #tpu.memory_space<vmem>>, vector<16x32xf32>
    %c0_1 = arith.constant 0 : index
    %c0_2 = arith.constant 0 : index
    %1 = vector.load %arg2[%c0_1, %c0_2] : memref<32x64xf32, #tpu.memory_space<vmem>>, vector<32x64xf32>
    %cst = arith.constant dense<0.000000e+00> : vector<16x64xf32>
    %2 = tpu.matmul %0, %1, %cst {dimension_numbers = #tpu.dot_dimension_numbers<[1], [0], [0], [1], [0, 0, 1, 1], [], []>} : vector<16x32xf32>, vector<32x64xf32>, vector<16x64xf32> -> vector<16x64xf32>
    %c0_3 = arith.constant 0 : index
    %c0_4 = arith.constant 0 : index
    %3 = vector.load %arg3[%c0_3, %c0_4] : memref<1x64xf32, #tpu.memory_space<vmem>>, vector<1x64xf32>
    %4 = vector.broadcast %3 : vector<1x64xf32> to vector<16x64xf32>
    %5 = arith.addf %2, %4 : vector<16x64xf32>
    %cst_5 = arith.constant 0.000000e+00 : f32
    %6 = vector.broadcast %cst_5 : f32 to vector<16x64xf32>
    %7 = arith.maximumf %5, %6 : vector<16x64xf32>
    %c0_6 = arith.constant 0 : index
    %c0_7 = arith.constant 0 : index
    %8 = vector.load %arg4[%c0_6, %c0_7] : memref<64x32xf32, #tpu.memory_space<vmem>>, vector<64x32xf32>
    %cst_8 = arith.constant dense<0.000000e+00> : vector<16x32xf32>
    %9 = tpu.matmul %7, %8, %cst_8 {dimension_numbers = #tpu.dot_dimension_numbers<[1], [0], [0], [1], [0, 0, 1, 1], [], []>} : vector<16x64xf32>, vector<64x32xf32>, vector<16x32xf32> -> vector<16x32xf32>
    %c0_9 = arith.constant 0 : index
    %c0_10 = arith.constant 0 : index
    %10 = vector.load %arg5[%c0_9, %c0_10] : memref<1x32xf32, #tpu.memory_space<vmem>>, vector<1x32xf32>
    %11 = vector.broadcast %10 : vector<1x32xf32> to vector<16x32xf32>
    %12 = arith.addf %9, %11 : vector<16x32xf32>
    %13 = arith.addf %0, %12 : vector<16x32xf32>
    %cst_11 = arith.constant dense<0.000000e+00> : vector<16xf32>
    %14 = vector.multi_reduction <add>, %13, %cst_11 [1] : vector<16x32xf32> to vector<16xf32>
    %15 = vector.shape_cast %14 : vector<16xf32> to vector<16x1xf32>
    %cst_12 = arith.constant 3.200000e+01 : f32
    %16 = vector.broadcast %cst_12 : f32 to vector<16x1xf32>
    %17 = arith.divf %15, %16 : vector<16x1xf32>
    %18 = vector.broadcast %17 : vector<16x1xf32> to vector<16x32xf32>
    %19 = arith.subf %13, %18 : vector<16x32xf32>
    %20 = arith.mulf %19, %19 : vector<16x32xf32>
    %cst_13 = arith.constant dense<0.000000e+00> : vector<16xf32>
    %21 = vector.multi_reduction <add>, %20, %cst_13 [1] : vector<16x32xf32> to vector<16xf32>
    %22 = vector.shape_cast %21 : vector<16xf32> to vector<16x1xf32>
    %cst_14 = arith.constant 3.200000e+01 : f32
    %23 = vector.broadcast %cst_14 : f32 to vector<16x1xf32>
    %24 = arith.divf %22, %23 : vector<16x1xf32>
    %25 = vector.broadcast %17 : vector<16x1xf32> to vector<16x32xf32>
    %26 = arith.subf %13, %25 : vector<16x32xf32>
    %cst_15 = arith.constant 9.99999974E-6 : f32
    %27 = vector.broadcast %cst_15 : f32 to vector<16x1xf32>
    %28 = arith.addf %24, %27 : vector<16x1xf32>
    %29 = math.rsqrt %28 : vector<16x1xf32>
    %30 = vector.broadcast %29 : vector<16x1xf32> to vector<16x32xf32>
    %31 = arith.mulf %26, %30 : vector<16x32xf32>
    %c0_16 = arith.constant 0 : index
    %c0_17 = arith.constant 0 : index
    %32 = vector.load %arg6[%c0_16, %c0_17] : memref<1x32xf32, #tpu.memory_space<vmem>>, vector<1x32xf32>
    %33 = vector.broadcast %32 : vector<1x32xf32> to vector<16x32xf32>
    %34 = arith.mulf %31, %33 : vector<16x32xf32>
    %c0_18 = arith.constant 0 : index
    %c0_19 = arith.constant 0 : index
    %35 = vector.load %arg7[%c0_18, %c0_19] : memref<1x32xf32, #tpu.memory_space<vmem>>, vector<1x32xf32>
    %36 = vector.broadcast %35 : vector<1x32xf32> to vector<16x32xf32>
    %37 = arith.addf %34, %36 : vector<16x32xf32>
    %c0_20 = arith.constant 0 : index
    %c0_21 = arith.constant 0 : index
    %38 = vector.load %arg8[%c0_20, %c0_21] : memref<16x32xf32, #tpu.memory_space<vmem>>, vector<16x32xf32>
    tpu.vector_store %arg8[%c0_20, %c0_21], %37 {strides = array<i32>} : memref<16x32xf32, #tpu.memory_space<vmem>>, vector<16x32xf32>,
    return
  }
  func.func @transform_0(%arg0: i32) -> (i32, i32) {
    %c0_i32 = arith.constant 0 : i32
    %c0_i32_0 = arith.constant 0 : i32
    return %arg0, %c0_i32 : i32, i32
  }
  func.func @transform_1(%arg0: i32) -> (i32, i32) {
    %c0_i32 = arith.constant 0 : i32
    %c0_i32_0 = arith.constant 0 : i32
    %c0_i32_1 = arith.constant 0 : i32
    return %c0_i32, %c0_i32_0 : i32, i32
  }
  func.func @transform_2(%arg0: i32) -> (i32, i32) {
    %c0_i32 = arith.constant 0 : i32
    %c0_i32_0 = arith.constant 0 : i32
    %c0_i32_1 = arith.constant 0 : i32
    return %c0_i32, %c0_i32_0 : i32, i32
  }
  func.func @transform_3(%arg0: i32) -> (i32, i32) {
    %c0_i32 = arith.constant 0 : i32
    %c0_i32_0 = arith.constant 0 : i32
    %c0_i32_1 = arith.constant 0 : i32
    return %c0_i32, %c0_i32_0 : i32, i32
  }
  func.func @transform_4(%arg0: i32) -> (i32, i32) {
    %c0_i32 = arith.constant 0 : i32
    %c0_i32_0 = arith.constant 0 : i32
    %c0_i32_1 = arith.constant 0 : i32
    return %c0_i32, %c0_i32_0 : i32, i32
  }
  func.func @transform_5(%arg0: i32) -> (i32, i32) {
    %c0_i32 = arith.constant 0 : i32
    %c0_i32_0 = arith.constant 0 : i32
    %c0_i32_1 = arith.constant 0 : i32
    return %c0_i32, %c0_i32_0 : i32, i32
  }
  func.func @transform_6(%arg0: i32) -> (i32, i32) {
    %c0_i32 = arith.constant 0 : i32
    %c0_i32_0 = arith.constant 0 : i32
    %c0_i32_1 = arith.constant 0 : i32
    return %c0_i32, %c0_i32_0 : i32, i32
  }
  func.func @transform_7(%arg0: i32) -> (i32, i32) {
    %c0_i32 = arith.constant 0 : i32
    %c0_i32_0 = arith.constant 0 : i32
    return %arg0, %c0_i32 : i32, i32
  }
}

module attributes {stable_mosaic.version = 11 : i64} {
  func.func @_attn_block_kernel(%arg0: i32, %arg1: memref<8x32xf32, #tpu.memory_space<vmem>>, %arg2: memref<32x96xf32, #tpu.memory_space<vmem>>, %arg3: memref<1x96xf32, #tpu.memory_space<vmem>>, %arg4: memref<32x32xf32, #tpu.memory_space<vmem>>, %arg5: memref<1x32xf32, #tpu.memory_space<vmem>>, %arg6: memref<1x32xf32, #tpu.memory_space<vmem>>, %arg7: memref<1x32xf32, #tpu.memory_space<vmem>>, %arg8: memref<8x32xf32, #tpu.memory_space<vmem>>) attributes {dimension_semantics = [#tpu.dimension_semantics<parallel>], iteration_bounds = array<i64: 2>, scalar_prefetch = 0 : i64, scratch_operands = 0 : i64, tpu.core_type = #tpu.core_type<tc>, window_params = [{transform_indices = @transform_0, window_bounds = array<i64: 8, 32>}, {pipeline_mode = #tpu.pipeline_mode<synchronous>, transform_indices = @transform_1, window_bounds = array<i64: 32, 96>}, {pipeline_mode = #tpu.pipeline_mode<synchronous>, transform_indices = @transform_2, window_bounds = array<i64: 1, 96>}, {pipeline_mode = #tpu.pipeline_mode<synchronous>, transform_indices = @transform_3, window_bounds = array<i64: 32, 32>}, {pipeline_mode = #tpu.pipeline_mode<synchronous>, transform_indices = @transform_4, window_bounds = array<i64: 1, 32>}, {pipeline_mode = #tpu.pipeline_mode<synchronous>, transform_indices = @transform_5, window_bounds = array<i64: 1, 32>}, {pipeline_mode = #tpu.pipeline_mode<synchronous>, transform_indices = @transform_6, window_bounds = array<i64: 1, 32>}, {transform_indices = @transform_7, window_bounds = array<i64: 8, 32>}]} {
    %c0 = arith.constant 0 : index
    %c0_0 = arith.constant 0 : index
    %0 = vector.load %arg1[%c0, %c0_0] : memref<8x32xf32, #tpu.memory_space<vmem>>, vector<8x32xf32>
    %c0_1 = arith.constant 0 : index
    %c0_2 = arith.constant 0 : index
    %1 = vector.load %arg2[%c0_1, %c0_2] : memref<32x96xf32, #tpu.memory_space<vmem>>, vector<32x96xf32>
    %cst = arith.constant dense<0.000000e+00> : vector<8x96xf32>
    %2 = tpu.matmul %0, %1, %cst {dimension_numbers = #tpu.dot_dimension_numbers<[1], [0], [0], [1], [0, 0, 1, 1], [], []>} : vector<8x32xf32>, vector<32x96xf32>, vector<8x96xf32> -> vector<8x96xf32>
    %c0_3 = arith.constant 0 : index
    %c0_4 = arith.constant 0 : index
    %3 = vector.load %arg3[%c0_3, %c0_4] : memref<1x96xf32, #tpu.memory_space<vmem>>, vector<1x96xf32>
    %4 = vector.broadcast %3 : vector<1x96xf32> to vector<8x96xf32>
    %5 = arith.addf %2, %4 : vector<8x96xf32>
    %6 = vector.extract_strided_slice %5 {offsets = [0, 0], sizes = [8, 8], strides = [1, 1]} : vector<8x96xf32> to vector<8x8xf32>
    %7 = vector.extract_strided_slice %5 {offsets = [0, 8], sizes = [8, 8], strides = [1, 1]} : vector<8x96xf32> to vector<8x8xf32>
    %8 = vector.extract_strided_slice %5 {offsets = [0, 16], sizes = [8, 8], strides = [1, 1]} : vector<8x96xf32> to vector<8x8xf32>
    %9 = vector.extract_strided_slice %5 {offsets = [0, 24], sizes = [8, 8], strides = [1, 1]} : vector<8x96xf32> to vector<8x8xf32>
    %10 = vector.shape_cast %6 : vector<8x8xf32> to vector<1x8x8xf32>
    %11 = vector.shape_cast %7 : vector<8x8xf32> to vector<1x8x8xf32>
    %12 = vector.shape_cast %8 : vector<8x8xf32> to vector<1x8x8xf32>
    %13 = vector.shape_cast %9 : vector<8x8xf32> to vector<1x8x8xf32>
    %14 = tpu.concatenate %10, %11, %12, %13 in 0 : vector<1x8x8xf32>, vector<1x8x8xf32>, vector<1x8x8xf32>, vector<1x8x8xf32> -> vector<4x8x8xf32>
    %15 = vector.extract_strided_slice %5 {offsets = [0, 32], sizes = [8, 8], strides = [1, 1]} : vector<8x96xf32> to vector<8x8xf32>
    %16 = vector.extract_strided_slice %5 {offsets = [0, 40], sizes = [8, 8], strides = [1, 1]} : vector<8x96xf32> to vector<8x8xf32>
    %17 = vector.extract_strided_slice %5 {offsets = [0, 48], sizes = [8, 8], strides = [1, 1]} : vector<8x96xf32> to vector<8x8xf32>
    %18 = vector.extract_strided_slice %5 {offsets = [0, 56], sizes = [8, 8], strides = [1, 1]} : vector<8x96xf32> to vector<8x8xf32>
    %19 = vector.shape_cast %15 : vector<8x8xf32> to vector<1x8x8xf32>
    %20 = vector.shape_cast %16 : vector<8x8xf32> to vector<1x8x8xf32>
    %21 = vector.shape_cast %17 : vector<8x8xf32> to vector<1x8x8xf32>
    %22 = vector.shape_cast %18 : vector<8x8xf32> to vector<1x8x8xf32>
    %23 = tpu.concatenate %19, %20, %21, %22 in 0 : vector<1x8x8xf32>, vector<1x8x8xf32>, vector<1x8x8xf32>, vector<1x8x8xf32> -> vector<4x8x8xf32>
    %24 = vector.extract_strided_slice %5 {offsets = [0, 64], sizes = [8, 8], strides = [1, 1]} : vector<8x96xf32> to vector<8x8xf32>
    %25 = vector.extract_strided_slice %5 {offsets = [0, 72], sizes = [8, 8], strides = [1, 1]} : vector<8x96xf32> to vector<8x8xf32>
    %26 = vector.extract_strided_slice %5 {offsets = [0, 80], sizes = [8, 8], strides = [1, 1]} : vector<8x96xf32> to vector<8x8xf32>
    %27 = vector.extract_strided_slice %5 {offsets = [0, 88], sizes = [8, 8], strides = [1, 1]} : vector<8x96xf32> to vector<8x8xf32>
    %28 = vector.shape_cast %24 : vector<8x8xf32> to vector<1x8x8xf32>
    %29 = vector.shape_cast %25 : vector<8x8xf32> to vector<1x8x8xf32>
    %30 = vector.shape_cast %26 : vector<8x8xf32> to vector<1x8x8xf32>
    %31 = vector.shape_cast %27 : vector<8x8xf32> to vector<1x8x8xf32>
    %32 = tpu.concatenate %28, %29, %30, %31 in 0 : vector<1x8x8xf32>, vector<1x8x8xf32>, vector<1x8x8xf32>, vector<1x8x8xf32> -> vector<4x8x8xf32>
    "tpu.trace_start"() <{level = 10 : i32, message = "hld,hmd->hlm"}> : () -> ()
    %cst_5 = arith.constant dense<0.000000e+00> : vector<4x8x8xf32>
    %33 = tpu.matmul %14, %23, %cst_5 {dimension_numbers = #tpu.dot_dimension_numbers<[2], [2], [1], [1], [0, 0, 0, 1, 1, 1], [0], [0]>} : vector<4x8x8xf32>, vector<4x8x8xf32>, vector<4x8x8xf32> -> vector<4x8x8xf32>
    "tpu.trace_stop"() : () -> ()
    %cst_6 = arith.constant dense<0xFF800000> : vector<4x8xf32>
    %34 = vector.multi_reduction <maximumf>, %33, %cst_6 [2] : vector<4x8x8xf32> to vector<4x8xf32>
    %35 = vector.shape_cast %34 : vector<4x8xf32> to vector<4x8x1xf32>
    %36 = vector.broadcast %35 : vector<4x8x1xf32> to vector<4x8x8xf32>
    %37 = arith.subf %33, %36 : vector<4x8x8xf32>
    %38 = math.exp %37 : vector<4x8x8xf32>
    %cst_7 = arith.constant dense<0.000000e+00> : vector<4x8xf32>
    %39 = vector.multi_reduction <add>, %38, %cst_7 [2] : vector<4x8x8xf32> to vector<4x8xf32>
    %40 = vector.shape_cast %39 : vector<4x8xf32> to vector<4x8x1xf32>
    %41 = tpu.reciprocal %40 : vector<4x8x1xf32> -> vector<4x8x1xf32>
    %42 = vector.broadcast %41 : vector<4x8x1xf32> to vector<4x8x8xf32>
    %43 = arith.mulf %38, %42 : vector<4x8x8xf32>
    "tpu.trace_start"() <{level = 10 : i32, message = "hlm,hmd->hld"}> : () -> ()
    %cst_8 = arith.constant dense<0.000000e+00> : vector<4x8x8xf32>
    %44 = tpu.matmul %43, %32, %cst_8 {dimension_numbers = #tpu.dot_dimension_numbers<[2], [1], [1], [2], [0, 0, 0, 1, 1, 2], [0], [0]>} : vector<4x8x8xf32>, vector<4x8x8xf32>, vector<4x8x8xf32> -> vector<4x8x8xf32>
    "tpu.trace_stop"() : () -> ()
    %45 = vector.extract_strided_slice %44 {offsets = [0, 0, 0], sizes = [1, 8, 8], strides = [1, 1, 1]} : vector<4x8x8xf32> to vector<1x8x8xf32>
    %46 = vector.shape_cast %45 : vector<1x8x8xf32> to vector<8x8xf32>
    %47 = vector.extract_strided_slice %44 {offsets = [1, 0, 0], sizes = [1, 8, 8], strides = [1, 1, 1]} : vector<4x8x8xf32> to vector<1x8x8xf32>
    %48 = vector.shape_cast %47 : vector<1x8x8xf32> to vector<8x8xf32>
    %49 = vector.extract_strided_slice %44 {offsets = [2, 0, 0], sizes = [1, 8, 8], strides = [1, 1, 1]} : vector<4x8x8xf32> to vector<1x8x8xf32>
    %50 = vector.shape_cast %49 : vector<1x8x8xf32> to vector<8x8xf32>
    %51 = vector.extract_strided_slice %44 {offsets = [3, 0, 0], sizes = [1, 8, 8], strides = [1, 1, 1]} : vector<4x8x8xf32> to vector<1x8x8xf32>
    %52 = vector.shape_cast %51 : vector<1x8x8xf32> to vector<8x8xf32>
    %53 = tpu.concatenate %46, %48, %50, %52 in 1 : vector<8x8xf32>, vector<8x8xf32>, vector<8x8xf32>, vector<8x8xf32> -> vector<8x32xf32>
    %c0_9 = arith.constant 0 : index
    %c0_10 = arith.constant 0 : index
    %54 = vector.load %arg4[%c0_9, %c0_10] : memref<32x32xf32, #tpu.memory_space<vmem>>, vector<32x32xf32>
    %cst_11 = arith.constant dense<0.000000e+00> : vector<8x32xf32>
    %55 = tpu.matmul %53, %54, %cst_11 {dimension_numbers = #tpu.dot_dimension_numbers<[1], [0], [0], [1], [0, 0, 1, 1], [], []>} : vector<8x32xf32>, vector<32x32xf32>, vector<8x32xf32> -> vector<8x32xf32>
    %c0_12 = arith.constant 0 : index
    %c0_13 = arith.constant 0 : index
    %56 = vector.load %arg5[%c0_12, %c0_13] : memref<1x32xf32, #tpu.memory_space<vmem>>, vector<1x32xf32>
    %57 = vector.broadcast %56 : vector<1x32xf32> to vector<8x32xf32>
    %58 = arith.addf %55, %57 : vector<8x32xf32>
    %59 = arith.addf %0, %58 : vector<8x32xf32>
    %cst_14 = arith.constant dense<0.000000e+00> : vector<8xf32>
    %60 = vector.multi_reduction <add>, %59, %cst_14 [1] : vector<8x32xf32> to vector<8xf32>
    %61 = vector.shape_cast %60 : vector<8xf32> to vector<8x1xf32>
    %cst_15 = arith.constant 3.200000e+01 : f32
    %62 = vector.broadcast %cst_15 : f32 to vector<8x1xf32>
    %63 = arith.divf %61, %62 : vector<8x1xf32>
    %64 = vector.broadcast %63 : vector<8x1xf32> to vector<8x32xf32>
    %65 = arith.subf %59, %64 : vector<8x32xf32>
    %66 = arith.mulf %65, %65 : vector<8x32xf32>
    %cst_16 = arith.constant dense<0.000000e+00> : vector<8xf32>
    %67 = vector.multi_reduction <add>, %66, %cst_16 [1] : vector<8x32xf32> to vector<8xf32>
    %68 = vector.shape_cast %67 : vector<8xf32> to vector<8x1xf32>
    %cst_17 = arith.constant 3.200000e+01 : f32
    %69 = vector.broadcast %cst_17 : f32 to vector<8x1xf32>
    %70 = arith.divf %68, %69 : vector<8x1xf32>
    %71 = vector.broadcast %63 : vector<8x1xf32> to vector<8x32xf32>
    %72 = arith.subf %59, %71 : vector<8x32xf32>
    %cst_18 = arith.constant 9.99999974E-6 : f32
    %73 = vector.broadcast %cst_18 : f32 to vector<8x1xf32>
    %74 = arith.addf %70, %73 : vector<8x1xf32>
    %75 = math.rsqrt %74 : vector<8x1xf32>
    %76 = vector.broadcast %75 : vector<8x1xf32> to vector<8x32xf32>
    %77 = arith.mulf %72, %76 : vector<8x32xf32>
    %c0_19 = arith.constant 0 : index
    %c0_20 = arith.constant 0 : index
    %78 = vector.load %arg6[%c0_19, %c0_20] : memref<1x32xf32, #tpu.memory_space<vmem>>, vector<1x32xf32>
    %79 = vector.broadcast %78 : vector<1x32xf32> to vector<8x32xf32>
    %80 = arith.mulf %77, %79 : vector<8x32xf32>
    %c0_21 = arith.constant 0 : index
    %c0_22 = arith.constant 0 : index
    %81 = vector.load %arg7[%c0_21, %c0_22] : memref<1x32xf32, #tpu.memory_space<vmem>>, vector<1x32xf32>
    %82 = vector.broadcast %81 : vector<1x32xf32> to vector<8x32xf32>
    %83 = arith.addf %80, %82 : vector<8x32xf32>
    %c0_23 = arith.constant 0 : index
    %c0_24 = arith.constant 0 : index
    %84 = vector.load %arg8[%c0_23, %c0_24] : memref<8x32xf32, #tpu.memory_space<vmem>>, vector<8x32xf32>
    tpu.vector_store %arg8[%c0_23, %c0_24], %83 {strides = array<i32>} : memref<8x32xf32, #tpu.memory_space<vmem>>, vector<8x32xf32>,
    return
  }
  func.func @transform_0(%arg0: i32) -> (i32, i32) {
    %c0_i32 = arith.constant 0 : i32
    %c0_i32_0 = arith.constant 0 : i32
    return %arg0, %c0_i32 : i32, i32
  }
  func.func @transform_1(%arg0: i32) -> (i32, i32) {
    %c0_i32 = arith.constant 0 : i32
    %c0_i32_0 = arith.constant 0 : i32
    %c0_i32_1 = arith.constant 0 : i32
    return %c0_i32, %c0_i32_0 : i32, i32
  }
  func.func @transform_2(%arg0: i32) -> (i32, i32) {
    %c0_i32 = arith.constant 0 : i32
    %c0_i32_0 = arith.constant 0 : i32
    %c0_i32_1 = arith.constant 0 : i32
    return %c0_i32, %c0_i32_0 : i32, i32
  }
  func.func @transform_3(%arg0: i32) -> (i32, i32) {
    %c0_i32 = arith.constant 0 : i32
    %c0_i32_0 = arith.constant 0 : i32
    %c0_i32_1 = arith.constant 0 : i32
    return %c0_i32, %c0_i32_0 : i32, i32
  }
  func.func @transform_4(%arg0: i32) -> (i32, i32) {
    %c0_i32 = arith.constant 0 : i32
    %c0_i32_0 = arith.constant 0 : i32
    %c0_i32_1 = arith.constant 0 : i32
    return %c0_i32, %c0_i32_0 : i32, i32
  }
  func.func @transform_5(%arg0: i32) -> (i32, i32) {
    %c0_i32 = arith.constant 0 : i32
    %c0_i32_0 = arith.constant 0 : i32
    %c0_i32_1 = arith.constant 0 : i32
    return %c0_i32, %c0_i32_0 : i32, i32
  }
  func.func @transform_6(%arg0: i32) -> (i32, i32) {
    %c0_i32 = arith.constant 0 : i32
    %c0_i32_0 = arith.constant 0 : i32
    %c0_i32_1 = arith.constant 0 : i32
    return %c0_i32, %c0_i32_0 : i32, i32
  }
  func.func @transform_7(%arg0: i32) -> (i32, i32) {
    %c0_i32 = arith.constant 0 : i32
    %c0_i32_0 = arith.constant 0 : i32
    return %arg0, %c0_i32 : i32, i32
  }
}

</mosaic_0001>

<llo_original>
// kernel: tpu_custom_call.1
$region0: #{tpu_custom_call.1}
  #allocation0 [shape = 'u32[]', space=smem, size = 0x4, offset = 0x4, fixed_abs, tag = 'smem constant byte address 0x4 - core index']
  #allocation1 [shape = 'u32[144,128]{1,0:T(1,128)}', space=vmem, size = 0x12000, scoped, tag = 'internal scratch']
  %s0 = inlined_call_operand.hbm [shape: f32[8,128], index: 0, kind: input, shape index: {}]
  %s1 = inlined_call_operand.hbm [shape: f32[8,128], index: 1, kind: output, shape index: {}]
  %s2 = sld [smem:[#allocation0]]
  $region18: #{tpu_custom_call.1} parent=0
    _
  %s4 = ssub.s32 1, %s2
  %s5 = scalar_select 0, %s4, %s2
  $region1: #{tpu_custom_call.1} parent=0
    #allocation2 [shape = 'u8[4096]{0}', space=vmem, size = 0x1000, scoped, tag = 'input window, operand 0, single buffered']
    #allocation3 [shape = 's32[1]{0}', space=sflag, size = 0x4, scoped, tag = 'scoped memory for tpu_custom_call.1']
    #allocation4 [shape = 's32[1]{0}', space=sflag, size = 0x4, scoped, tag = 'scoped memory for tpu_custom_call.1']
    #allocation5 [shape = 'u8[4096]{0}', space=vmem, size = 0x1000, scoped, tag = 'output window, operand 0, single buffered']
    %6 = vsyncpa [#allocation3], 0
    %7 = vsyncpa [#allocation4], 0
    // Predicated region
    $region2: #{tpu_custom_call.1} parent=1 // pred_check
      _
    $region3: #{tpu_custom_call.1} parent=1 // pred_check_branch
      %9 = sbr.rel (0) target = $region5
    $region4: #{tpu_custom_call.1} parent=1 // pred_region
      %s11 = ssub.s32 128, 128
      %12 = vsyncadd [#allocation3], %s11
      %s14 = sshll.u32 [#allocation2], 4
      %s15 = int_to_ptr.vmem [resolvable:$true] %s14
      %17 = dma.hbm_to_vmem [thread:$0]  %s0, 128, %s15, [#allocation3]
    $region5: #{tpu_custom_call.1} parent=1 // pred_fallthru
      _
    // Predicated region
    $region6: #{tpu_custom_call.1} parent=1 // pred_check
      _
    $region7: #{tpu_custom_call.1} parent=1 // pred_check_branch
      %19 = sbr.rel (0) target = $region9
    $region8: #{tpu_custom_call.1} parent=1 // pred_region
      %20 = dma.done [#allocation3], 128
    $region9: #{tpu_custom_call.1} parent=1 // pred_fallthru
      _
    %v21 = vld [vmem:[#allocation2] sm:$0xff]
    %22 = vst [vmem:[#allocation5] sm:$0xff] %v21
    // Predicated region
    $region10: #{tpu_custom_call.1} parent=1 // pred_check
      _
    $region11: #{tpu_custom_call.1} parent=1 // pred_check_branch
      %24 = sbr.rel (0) target = $region13
    $region12: #{tpu_custom_call.1} parent=1 // pred_region
      %s26 = ssub.s32 128, 128
      %27 = vsyncadd [#allocation4], %s26
      %s29 = sshll.u32 [#allocation5], 4
      %s30 = int_to_ptr.vmem [resolvable:$true] %s29
      %32 = dma.vmem_to_hbm [thread:$0]  %s30, 128, %s1, [#allocation4]
    $region13: #{tpu_custom_call.1} parent=1 // pred_fallthru
      _
    // Predicated region
    $region14: #{tpu_custom_call.1} parent=1 // pred_check
      _
    $region15: #{tpu_custom_call.1} parent=1 // pred_check_branch
      %34 = sbr.rel (0) target = $region17
    $region16: #{tpu_custom_call.1} parent=1 // pred_region
      %35 = dma.done [#allocation4], 128
    $region17: #{tpu_custom_call.1} parent=1 // pred_fallthru
      _
    %36 = vsyncpa [#allocation3], 1
    %37 = vsyncpa [#allocation4], 1

// kernel: trans_encoder_layer_forward.3
$region0: #{trans_encoder_layer_forward.3}
  #allocation0 [shape = 'u32[]', space=smem, size = 0x4, offset = 0x4, fixed_abs, tag = 'smem constant byte address 0x4 - core index']
  #allocation1 [shape = 'u32[144,128]{1,0:T(1,128)}', space=vmem, size = 0x12000, scoped, tag = 'internal scratch']
  %s0 = inlined_call_operand.vmem [shape: f32[16,32], index: 0, kind: input, shape index: {}]
  %s1 = inlined_call_operand.vmem [shape: f32[32,64], index: 1, kind: input, shape index: {}]
  %s2 = inlined_call_operand.vmem [shape: f32[1,64], index: 2, kind: input, shape index: {}]
  %s3 = inlined_call_operand.vmem [shape: f32[64,32], index: 3, kind: input, shape index: {}]
  %s4 = inlined_call_operand.vmem [shape: f32[1,32], index: 4, kind: input, shape index: {}]
  %s5 = inlined_call_operand.vmem [shape: f32[1,32], index: 5, kind: input, shape index: {}]
  %s6 = inlined_call_operand.vmem [shape: f32[1,32], index: 6, kind: input, shape index: {}]
  %s7 = inlined_call_operand.vmem [shape: f32[16,32], index: 7, kind: output, shape index: {}]
  %s8 = sld [smem:[#allocation0]]
  $region38: #{trans_encoder_layer_forward.3} parent=0
    _
  %s10 = ssub.s32 1, %s8
  %s11 = scalar_select 0, %s10, %s8
  // Predicated region
  $region2: #{trans_encoder_layer_forward.3} parent=0 // pred_check
    _
  $region3: #{trans_encoder_layer_forward.3} parent=0 // pred_check_branch
    %13 = sbr.rel (0) target = $region5
  $region4: #{trans_encoder_layer_forward.3} parent=0 // pred_region
    _
  $region5: #{trans_encoder_layer_forward.3} parent=0 // pred_fallthru
    _
  // Predicated region
  $region6: #{trans_encoder_layer_forward.3} parent=0 // pred_check
    _
  $region7: #{trans_encoder_layer_forward.3} parent=0 // pred_check_branch
    %15 = sbr.rel (0) target = $region9
  $region8: #{trans_encoder_layer_forward.3} parent=0 // pred_region
    _
  $region9: #{trans_encoder_layer_forward.3} parent=0 // pred_fallthru
    _
  // Predicated region
  $region10: #{trans_encoder_layer_forward.3} parent=0 // pred_check
    _
  $region11: #{trans_encoder_layer_forward.3} parent=0 // pred_check_branch
    %17 = sbr.rel (0) target = $region13
  $region12: #{trans_encoder_layer_forward.3} parent=0 // pred_region
    _
  $region13: #{trans_encoder_layer_forward.3} parent=0 // pred_fallthru
    _
  // Predicated region
  $region14: #{trans_encoder_layer_forward.3} parent=0 // pred_check
    _
  $region15: #{trans_encoder_layer_forward.3} parent=0 // pred_check_branch
    %19 = sbr.rel (0) target = $region17
  $region16: #{trans_encoder_layer_forward.3} parent=0 // pred_region
    _
  $region17: #{trans_encoder_layer_forward.3} parent=0 // pred_fallthru
    _
  // Predicated region
  $region18: #{trans_encoder_layer_forward.3} parent=0 // pred_check
    _
  $region19: #{trans_encoder_layer_forward.3} parent=0 // pred_check_branch
    %21 = sbr.rel (0) target = $region21
  $region20: #{trans_encoder_layer_forward.3} parent=0 // pred_region
    _
  $region21: #{trans_encoder_layer_forward.3} parent=0 // pred_fallthru
    _
  // Predicated region
  $region22: #{trans_encoder_layer_forward.3} parent=0 // pred_check
    _
  $region23: #{trans_encoder_layer_forward.3} parent=0 // pred_check_branch
    %23 = sbr.rel (0) target = $region25
  $region24: #{trans_encoder_layer_forward.3} parent=0 // pred_region
    _
  $region25: #{trans_encoder_layer_forward.3} parent=0 // pred_fallthru
    _
  // Predicated region
  $region26: #{trans_encoder_layer_forward.3} parent=0 // pred_check
    _
  $region27: #{trans_encoder_layer_forward.3} parent=0 // pred_check_branch
    %25 = sbr.rel (0) target = $region29
  $region28: #{trans_encoder_layer_forward.3} parent=0 // pred_region
    _
  $region29: #{trans_encoder_layer_forward.3} parent=0 // pred_fallthru
    _
  %v26 = vld [vmem:[%s0] sm:$0xff]
  %v27 = vld [vmem:[%s0 + $0x8] sm:$0xff]
  %v28 = vld [vmem:[%s1] sm:$0xff]
  %v29 = vld [vmem:[%s1 + $0x8] sm:$0xff]
  %v30 = vld [vmem:[%s1 + $0x10] sm:$0xff]
  %v31 = vld [vmem:[%s1 + $0x18] sm:$0xff]
  %v32 = vld [vmem:[%s2] sm:$0x1]
  %v34 = vlaneseq
  %v35 = vshrl.u32 %v34, 7
  %v36 = vsub.s32 0, %v35
  %v37 = vrot.slane %v32, %v36
  %vm39 = vcmask 261120
  %v41 = vsel %vm39, %v26, 0
  %v44 = vsel %vm39, %v27, 0
  %46 = vmatprep.subr.mxu0 0.0
  %47 = vmatpush1.msra.mxu0 0.0
  %48 = vmatprep.subr.mxu0 0.0
  %49 = vmatpush1.msra.mxu0 0.0
  %50 = vmatprep.subr.mxu0 0.0
  %51 = vmatpush1.msra.mxu0 0.0
  %52 = vmatprep.subr.mxu0 0.0
  %53 = vmatpush1.msra.mxu0 0.0
  %54 = vmatprep.subr.mxu0 0.0
  %55 = vmatpush1.msra.mxu0 0.0
  %56 = vmatprep.subr.mxu0 0.0
  %57 = vmatpush1.msra.mxu0 0.0
  %58 = vmatprep.subr.mxu0 0.0
  %59 = vmatpush1.msra.mxu0 0.0
  %60 = vmatprep.subr.mxu0 0.0
  %61 = vmatpush1.msra.mxu0 0.0
  %62 = vmatprep.subr.mxu0 0.0
  %63 = vmatpush1.msra.mxu0 0.0
  %64 = vmatprep.subr.mxu0 0.0
  %65 = vmatpush1.msra.mxu0 0.0
  %66 = vmatprep.subr.mxu0 0.0
  %67 = vmatpush1.msra.mxu0 0.0
  %68 = vmatprep.subr.mxu0 0.0
  %69 = vmatpush1.msra.mxu0 0.0
  %70 = vmatprep.subr.mxu0 0.0
  %71 = vmatpush1.msra.mxu0 %v31
  %72 = vmatprep.subr.mxu0 0.0
  %73 = vmatpush1.msra.mxu0 %v30
  %74 = vmatprep.subr.mxu0 0.0
  %75 = vmatpush1.msra.mxu0 %v29
  %76 = vmatprep.subr.mxu0 0.0
  %77 = vmatpush1.msra.mxu0 %v28
  %78 = vmatprep.subr.mxu0 0.0
  %79 = vmatpush2.msra.mxu0 0.0
  %80 = vmatprep.subr.mxu0 0.0
  %81 = vmatpush2.msra.mxu0 0.0
  %82 = vmatprep.subr.mxu0 0.0
  %83 = vmatpush2.msra.mxu0 0.0
  %84 = vmatprep.subr.mxu0 0.0
  %85 = vmatpush2.msra.mxu0 0.0
  %86 = vmatprep.subr.mxu0 0.0
  %87 = vmatpush2.msra.mxu0 0.0
  %88 = vmatprep.subr.mxu0 0.0
  %89 = vmatpush2.msra.mxu0 0.0
  %90 = vmatprep.subr.mxu0 0.0
  %91 = vmatpush2.msra.mxu0 0.0
  %92 = vmatprep.subr.mxu0 0.0
  %93 = vmatpush2.msra.mxu0 0.0
  %94 = vmatprep.subr.mxu0 0.0
  %95 = vmatpush2.msra.mxu0 0.0
  %96 = vmatprep.subr.mxu0 0.0
  %97 = vmatpush2.msra.mxu0 0.0
  %98 = vmatprep.subr.mxu0 0.0
  %99 = vmatpush2.msra.mxu0 0.0
  %100 = vmatprep.subr.mxu0 0.0
  %101 = vmatpush2.msra.mxu0 0.0
  %102 = vmatprep.subr.mxu0 0.0
  %103 = vmatpush2.msra.mxu0 0.0
  %104 = vmatprep.subr.mxu0 0.0
  %105 = vmatpush2.msra.mxu0 0.0
  %106 = vmatprep.subr.mxu0 0.0
  %107 = vmatpush2.msra.mxu0 0.0
  %108 = vmatprep.subr.mxu0 0.0
  %109 = vmatpush2.msra.mxu0 0.0
  %110 = vmatprep.mubr.f32.mxu0 0.0
  %111 = vmatmul.mubr.f32.gmra.mxu0 %v41
  %v112 = vpop.f32.mrf.mxu0
  %v113 = vadd.f32 %v37, %v112
  %v114 = vpop.f32.mrf.mxu0
  %115 = vmatprep.mubr.f32.mxu0 0.0
  %116 = vmatmul.mubr.f32.gmra.mxu0 %v44
  %v117 = vpop.f32.mrf.mxu0
  %v118 = vadd.f32 %v37, %v117
  %v119 = vpop.f32.mrf.mxu0
  %120 = vdwg.mxu0
  %v121 = vmax.f32 %v113, 0.0
  %v122 = vmax.f32 %v118, 0.0
  %v123 = vld [vmem:[%s3] sm:$0xff]
  %v124 = vld [vmem:[%s3 + $0x8] sm:$0xff]
  %v125 = vld [vmem:[%s3 + $0x10] sm:$0xff]
  %v126 = vld [vmem:[%s3 + $0x18] sm:$0xff]
  %v127 = vld [vmem:[%s3 + $0x20] sm:$0xff]
  %v128 = vld [vmem:[%s3 + $0x28] sm:$0xff]
  %v129 = vld [vmem:[%s3 + $0x30] sm:$0xff]
  %v130 = vld [vmem:[%s3 + $0x38] sm:$0xff]
  %v131 = vld [vmem:[%s4] sm:$0x1]
  %v133 = vlaneseq
  %v134 = vshrl.u32 %v133, 7
  %v135 = vsub.s32 0, %v134
  %v136 = vrot.slane %v131, %v135
  %vm138 = vcmask 523264
  %v140 = vsel %vm138, %v121, 0
  %v143 = vsel %vm138, %v122, 0
  %145 = vmatprep.subr.mxu0 0.0
  %146 = vmatpush1.msra.mxu0 0.0
  %147 = vmatprep.subr.mxu0 0.0
  %148 = vmatpush1.msra.mxu0 0.0
  %149 = vmatprep.subr.mxu0 0.0
  %150 = vmatpush1.msra.mxu0 0.0
  %151 = vmatprep.subr.mxu0 0.0
  %152 = vmatpush1.msra.mxu0 0.0
  %153 = vmatprep.subr.mxu0 0.0
  %154 = vmatpush1.msra.mxu0 0.0
  %155 = vmatprep.subr.mxu0 0.0
  %156 = vmatpush1.msra.mxu0 0.0
  %157 = vmatprep.subr.mxu0 0.0
  %158 = vmatpush1.msra.mxu0 0.0
  %159 = vmatprep.subr.mxu0 0.0
  %160 = vmatpush1.msra.mxu0 0.0
  %161 = vmatprep.subr.mxu0 0.0
  %162 = vmatpush1.msra.mxu0 %v130
  %163 = vmatprep.subr.mxu0 0.0
  %164 = vmatpush1.msra.mxu0 %v129
  %165 = vmatprep.subr.mxu0 0.0
  %166 = vmatpush1.msra.mxu0 %v128
  %167 = vmatprep.subr.mxu0 0.0
  %168 = vmatpush1.msra.mxu0 %v127
  %169 = vmatprep.subr.mxu0 0.0
  %170 = vmatpush1.msra.mxu0 %v126
  %171 = vmatprep.subr.mxu0 0.0
  %172 = vmatpush1.msra.mxu0 %v125
  %173 = vmatprep.subr.mxu0 0.0
  %174 = vmatpush1.msra.mxu0 %v124
  %175 = vmatprep.subr.mxu0 0.0
  %176 = vmatpush1.msra.mxu0 %v123
  %177 = vmatprep.subr.mxu0 0.0
  %178 = vmatpush2.msra.mxu0 0.0
  %179 = vmatprep.subr.mxu0 0.0
  %180 = vmatpush2.msra.mxu0 0.0
  %181 = vmatprep.subr.mxu0 0.0
  %182 = vmatpush2.msra.mxu0 0.0
  %183 = vmatprep.subr.mxu0 0.0
  %184 = vmatpush2.msra.mxu0 0.0
  %185 = vmatprep.subr.mxu0 0.0
  %186 = vmatpush2.msra.mxu0 0.0
  %187 = vmatprep.subr.mxu0 0.0
  %188 = vmatpush2.msra.mxu0 0.0
  %189 = vmatprep.subr.mxu0 0.0
  %190 = vmatpush2.msra.mxu0 0.0
  %191 = vmatprep.subr.mxu0 0.0
  %192 = vmatpush2.msra.mxu0 0.0
  %193 = vmatprep.subr.mxu0 0.0
  %194 = vmatpush2.msra.mxu0 0.0
  %195 = vmatprep.subr.mxu0 0.0
  %196 = vmatpush2.msra.mxu0 0.0
  %197 = vmatprep.subr.mxu0 0.0
  %198 = vmatpush2.msra.mxu0 0.0
  %199 = vmatprep.subr.mxu0 0.0
  %200 = vmatpush2.msra.mxu0 0.0
  %201 = vmatprep.subr.mxu0 0.0
  %202 = vmatpush2.msra.mxu0 0.0
  %203 = vmatprep.subr.mxu0 0.0
  %204 = vmatpush2.msra.mxu0 0.0
  %205 = vmatprep.subr.mxu0 0.0
  %206 = vmatpush2.msra.mxu0 0.0
  %207 = vmatprep.subr.mxu0 0.0
  %208 = vmatpush2.msra.mxu0 0.0
  %209 = vmatprep.mubr.f32.mxu0 0.0
  %210 = vmatmul.mubr.f32.gmra.mxu0 %v140
  %v211 = vpop.f32.mrf.mxu0
  %v212 = vadd.f32 %v136, %v211
  %v213 = vpop.f32.mrf.mxu0
  %214 = vmatprep.mubr.f32.mxu0 0.0
  %215 = vmatmul.mubr.f32.gmra.mxu0 %v143
  %v216 = vpop.f32.mrf.mxu0
  %v217 = vadd.f32 %v136, %v216
  %v218 = vpop.f32.mrf.mxu0
  %219 = vdwg.mxu0
  %v220 = vadd.f32 %v26, %v212
  %v221 = vadd.f32 %v27, %v217
  %v222 = vsel %vm39, %v220, 0.0
  %223 = vadd.xlane.f32.xlu0 %v222
  %v224 = vpop.xlane.xlu0 %223
  %v225 = vsel %vm39, %v221, 0.0
  %226 = vadd.xlane.f32.xlu0 %v225
  %v227 = vpop.xlane.xlu0 %226
  %v228 = vrcp.pop 32.0
  %v229 = vmul.f32 %v224, %v228
  %v230 = vmul.f32 %v227, %v228
  %v231 = vsub.f32 %v220, %v229
  %v232 = vsub.f32 %v221, %v230
  %v233 = vmul.f32 %v231, %v231
  %v234 = vmul.f32 %v232, %v232
  %v235 = vsel %vm39, %v233, 0.0
  %236 = vadd.xlane.f32.xlu0 %v235
  %v237 = vpop.xlane.xlu0 %236
  %v238 = vsel %vm39, %v234, 0.0
  %239 = vadd.xlane.f32.xlu0 %v238
  %v240 = vpop.xlane.xlu0 %239
  %v241 = vmul.f32 %v237, %v228
  %v242 = vmul.f32 %v240, %v228
  %v243 = vadd.f32 %v241, 1e-05
  %v244 = vadd.f32 %v242, 1e-05
  %v245 = vrsqrt.pop %v243
  %v246 = vrsqrt.pop %v244
  %v247 = vmul.f32 %v231, %v245
  %v248 = vmul.f32 %v232, %v246
  %v249 = vld [vmem:[%s5] sm:$0x1]
  %v251 = vlaneseq
  %v252 = vshrl.u32 %v251, 7
  %v253 = vsub.s32 0, %v252
  %v254 = vrot.slane %v249, %v253
  %v256 = vmul.f32 %v247, %v254
  %v257 = vmul.f32 %v248, %v254
  %v258 = vld [vmem:[%s6] sm:$0x1]
  %v260 = vlaneseq
  %v261 = vshrl.u32 %v260, 7
  %v262 = vsub.s32 0, %v261
  %v263 = vrot.slane %v258, %v262
  %v265 = vadd.f32 %v256, %v263
  %v266 = vadd.f32 %v257, %v263
  %267 = vst.msk [vmem:[%s7] sm:$0xff] %vm39, %v265
  %268 = vst.msk [vmem:[%s7 + $0x8] sm:$0xff] %vm39, %v266
  // Predicated region
  $region30: #{trans_encoder_layer_forward.3} parent=0 // pred_check
    _
  $region31: #{trans_encoder_layer_forward.3} parent=0 // pred_check_branch
    %270 = sbr.rel (0) target = $region33
  $region32: #{trans_encoder_layer_forward.3} parent=0 // pred_region
    _
  $region33: #{trans_encoder_layer_forward.3} parent=0 // pred_fallthru
    _
  // Predicated region
  $region34: #{trans_encoder_layer_forward.3} parent=0 // pred_check
    _
  $region35: #{trans_encoder_layer_forward.3} parent=0 // pred_check_branch
    %272 = sbr.rel (0) target = $region37
  $region36: #{trans_encoder_layer_forward.3} parent=0 // pred_region
    _
  $region37: #{trans_encoder_layer_forward.3} parent=0 // pred_fallthru
    _

// kernel: trans_encoder_layer_forward.2
$region0: #{trans_encoder_layer_forward.2}
  #allocation0 [shape = 'u32[]', space=smem, size = 0x4, offset = 0x4, fixed_abs, tag = 'smem constant byte address 0x4 - core index']
  #allocation1 [shape = 'u32[144,128]{1,0:T(1,128)}', space=vmem, size = 0x12000, scoped, tag = 'internal scratch']
  %s0 = inlined_call_operand.vmem [shape: f32[16,32], index: 0, kind: input, shape index: {}]
  %s1 = inlined_call_operand.vmem [shape: f32[32,96], index: 1, kind: input, shape index: {}]
  %s2 = inlined_call_operand.vmem [shape: f32[1,96], index: 2, kind: input, shape index: {}]
  %s3 = inlined_call_operand.hbm [shape: f32[32,32], index: 3, kind: input, shape index: {}]
  %s4 = inlined_call_operand.vmem [shape: f32[1,32], index: 4, kind: input, shape index: {}]
  %s5 = inlined_call_operand.vmem [shape: f32[1,32], index: 5, kind: input, shape index: {}]
  %s6 = inlined_call_operand.vmem [shape: f32[1,32], index: 6, kind: input, shape index: {}]
  %s7 = inlined_call_operand.vmem [shape: f32[16,32], index: 7, kind: output, shape index: {}]
  %s8 = sld [smem:[#allocation0]]
  $region65: #{trans_encoder_layer_forward.2} parent=0
    _
  %s10 = ssub.s32 1, %s8
  %s11 = scalar_select 0, %s10, %s8
  $region1: #{trans_encoder_layer_forward.2} parent=0
    #allocation2 [shape = 'u8[16384]{0}', space=vmem, size = 0x4000, scoped, tag = 'input window, operand 3, single buffered']
    #allocation3 [shape = 's32[2]{0}', space=sflag, size = 0x8, scoped, tag = 'scoped memory for trans_encoder_layer_forward.2']
    %12 = vsyncpa [#allocation3], 0
    loop: start=0, step=1, limit=4
    $region2: #{trans_encoder_layer_forward.2} parent=1 // loop_pre_header
      _
    $region3: #{trans_encoder_layer_forward.2} parent=1 // loop_header
      %s14 = sphi 0, %s18
      %p15 = scmp.ge.s32.totalorder %s14, 4
      %s24 = sphi 0, %s26
      %s27 = sphi 0, %s24
      %s28 = sphi 0, %s27
      %s44 = sphi 0, %s28
      %s48 = sphi 0, %s48
      %s50 = sphi 0, %s48
      %s51 = sphi 0, %s50
      %s65 = sphi 0, %s51
      %s69 = sphi 0, %s69
      %s71 = sphi 0, %s69
      %s72 = sphi 0, %s71
      %s86 = sphi 0, %s72
      %s90 = sphi 0, %s90
      %s92 = sphi 0, %s90
      %s93 = sphi 0, %s92
      %s107 = sphi 0, %s93
      %s111 = sphi 0, %s111
      %s113 = sphi 0, %s111
      %s114 = sphi 0, %s113
      %s128 = sphi 0, %s114
      %s132 = sphi 0, %s132
      %s134 = sphi 0, %s132
      %s135 = sphi 0, %s134
      %s149 = sphi 0, %s135
      %s153 = sphi 0, %s153
      %s155 = sphi 0, %s153
      %s156 = sphi 0, %s155
      %s170 = sphi 0, %s156
      %s176 = sphi 0, %s178
      %s179 = sphi 0, %s176
      %s180 = sphi 0, %s179
      %s196 = sphi 0, %s180
    $region4: #{trans_encoder_layer_forward.2} parent=1 // loop_header_branch
      %17 = sbr.rel (%p15) target = $region8
    $region5: #{trans_encoder_layer_forward.2} parent=1 // loop_body
      %s19 = ssub.s32 %s14, 1
      %s20 = ssub.s32 %s14, 2
      %s21 = sadd.s32 %s14, 1
      %s22 = ssub.s32 %s14, %s21
      %p23 = scmp.eq.s32.totalorder %s22, 0
      %s25 = sadd.s32 %s24, 1
      %s26 = scalar_select %p23, %s24, %s25
      %p29 = pneg %p23
      %p30 = scmp.eq.s32.totalorder %s14, 1
      %p31 = por %p29, %p30
      %p32 = scmp.ne.s32.totalorder %s24, %s27
      %p33 = scmp.eq.s32.totalorder %s14, 0
      %p34 = por %p32, %p33
      %p35 = scmp.ne.s32.totalorder %s24, %s27
      %p36 = scmp.eq.s32.totalorder %s19, 1
      %p37 = por %p35, %p36
      %p38 = scmp.ne.s32.totalorder %s27, %s28
      %p39 = scmp.eq.s32.totalorder %s19, 0
      %p40 = por %p38, %p39
      %p41 = scmp.ne.s32.totalorder %s27, %s28
      %p42 = scmp.eq.s32.totalorder %s20, 1
      %p43 = por %p41, %p42
      %p45 = scmp.ne.s32.totalorder %s28, %s44
      %p46 = scmp.eq.s32.totalorder %s20, 0
      %p47 = por %p45, %p46
      %s49 = sadd.s32 %s48, 1
      %p52 = scmp.eq.s32.totalorder %s14, 1
      %p53 = scmp.ne.s32.totalorder %s48, %s50
      %p54 = scmp.eq.s32.totalorder %s14, 0
      %p55 = por %p53, %p54
      %p56 = scmp.ne.s32.totalorder %s48, %s50
      %p57 = scmp.eq.s32.totalorder %s19, 1
      %p58 = por %p56, %p57
      %p59 = scmp.ne.s32.totalorder %s50, %s51
      %p60 = scmp.eq.s32.totalorder %s19, 0
      %p61 = por %p59, %p60
      %p62 = scmp.ne.s32.totalorder %s50, %s51
      %p63 = scmp.eq.s32.totalorder %s20, 1
      %p64 = por %p62, %p63
      %p66 = scmp.ne.s32.totalorder %s51, %s65
      %p67 = scmp.eq.s32.totalorder %s20, 0
      %p68 = por %p66, %p67
      %s70 = sadd.s32 %s69, 1
      %p73 = scmp.eq.s32.totalorder %s14, 1
      %p74 = scmp.ne.s32.totalorder %s69, %s71
      %p75 = scmp.eq.s32.totalorder %s14, 0
      %p76 = por %p74, %p75
      %p77 = scmp.ne.s32.totalorder %s69, %s71
      %p78 = scmp.eq.s32.totalorder %s19, 1
      %p79 = por %p77, %p78
      %p80 = scmp.ne.s32.totalorder %s71, %s72
      %p81 = scmp.eq.s32.totalorder %s19, 0
      %p82 = por %p80, %p81
      %p83 = scmp.ne.s32.totalorder %s71, %s72
      %p84 = scmp.eq.s32.totalorder %s20, 1
      %p85 = por %p83, %p84
      %p87 = scmp.ne.s32.totalorder %s72, %s86
      %p88 = scmp.eq.s32.totalorder %s20, 0
      %p89 = por %p87, %p88
      %s91 = sadd.s32 %s90, 1
      %p94 = scmp.eq.s32.totalorder %s14, 1
      %p95 = scmp.ne.s32.totalorder %s90, %s92
      %p96 = scmp.eq.s32.totalorder %s14, 0
      %p97 = por %p95, %p96
      %p98 = scmp.ne.s32.totalorder %s90, %s92
      %p99 = scmp.eq.s32.totalorder %s19, 1
      %p100 = por %p98, %p99
      %p101 = scmp.ne.s32.totalorder %s92, %s93
      %p102 = scmp.eq.s32.totalorder %s19, 0
      %p103 = por %p101, %p102
      %p104 = scmp.ne.s32.totalorder %s92, %s93
      %p105 = scmp.eq.s32.totalorder %s20, 1
      %p106 = por %p104, %p105
      %p108 = scmp.ne.s32.totalorder %s93, %s107
      %p109 = scmp.eq.s32.totalorder %s20, 0
      %p110 = por %p108, %p109
      %s112 = sadd.s32 %s111, 1
      %p115 = scmp.eq.s32.totalorder %s14, 1
      %p116 = scmp.ne.s32.totalorder %s111, %s113
      %p117 = scmp.eq.s32.totalorder %s14, 0
      %p118 = por %p116, %p117
      %p119 = scmp.ne.s32.totalorder %s111, %s113
      %p120 = scmp.eq.s32.totalorder %s19, 1
      %p121 = por %p119, %p120
      %p122 = scmp.ne.s32.totalorder %s113, %s114
      %p123 = scmp.eq.s32.totalorder %s19, 0
      %p124 = por %p122, %p123
      %p125 = scmp.ne.s32.totalorder %s113, %s114
      %p126 = scmp.eq.s32.totalorder %s20, 1
      %p127 = por %p125, %p126
      %p129 = scmp.ne.s32.totalorder %s114, %s128
      %p130 = scmp.eq.s32.totalorder %s20, 0
      %p131 = por %p129, %p130
      %s133 = sadd.s32 %s132, 1
      %p136 = scmp.eq.s32.totalorder %s14, 1
      %p137 = scmp.ne.s32.totalorder %s132, %s134
      %p138 = scmp.eq.s32.totalorder %s14, 0
      %p139 = por %p137, %p138
      %p140 = scmp.ne.s32.totalorder %s132, %s134
      %p141 = scmp.eq.s32.totalorder %s19, 1
      %p142 = por %p140, %p141
      %p143 = scmp.ne.s32.totalorder %s134, %s135
      %p144 = scmp.eq.s32.totalorder %s19, 0
      %p145 = por %p143, %p144
      %p146 = scmp.ne.s32.totalorder %s134, %s135
      %p147 = scmp.eq.s32.totalorder %s20, 1
      %p148 = por %p146, %p147
      %p150 = scmp.ne.s32.totalorder %s135, %s149
      %p151 = scmp.eq.s32.totalorder %s20, 0
      %p152 = por %p150, %p151
      %s154 = sadd.s32 %s153, 1
      %p157 = scmp.eq.s32.totalorder %s14, 1
      %p158 = scmp.ne.s32.totalorder %s153, %s155
      %p159 = scmp.eq.s32.totalorder %s14, 0
      %p160 = por %p158, %p159
      %p161 = scmp.ne.s32.totalorder %s153, %s155
      %p162 = scmp.eq.s32.totalorder %s19, 1
      %p163 = por %p161, %p162
      %p164 = scmp.ne.s32.totalorder %s155, %s156
      %p165 = scmp.eq.s32.totalorder %s19, 0
      %p166 = por %p164, %p165
      %p167 = scmp.ne.s32.totalorder %s155, %s156
      %p168 = scmp.eq.s32.totalorder %s20, 1
      %p169 = por %p167, %p168
      %p171 = scmp.ne.s32.totalorder %s156, %s170
      %p172 = scmp.eq.s32.totalorder %s20, 0
      %p173 = por %p171, %p172
      %s174 = ssub.s32 %s14, %s21
      %p175 = scmp.eq.s32.totalorder %s174, 0
      %s177 = sadd.s32 %s176, 1
      %s178 = scalar_select %p175, %s176, %s177
      %p181 = pneg %p175
      %p182 = scmp.eq.s32.totalorder %s14, 1
      %p183 = por %p181, %p182
      %p184 = scmp.ne.s32.totalorder %s176, %s179
      %p185 = scmp.eq.s32.totalorder %s14, 0
      %p186 = por %p184, %p185
      %p187 = scmp.ne.s32.totalorder %s176, %s179
      %p188 = scmp.eq.s32.totalorder %s19, 1
      %p189 = por %p187, %p188
      %p190 = scmp.ne.s32.totalorder %s179, %s180
      %p191 = scmp.eq.s32.totalorder %s19, 0
      %p192 = por %p190, %p191
      %p193 = scmp.ne.s32.totalorder %s179, %s180
      %p194 = scmp.eq.s32.totalorder %s20, 1
      %p195 = por %p193, %p194
      %p197 = scmp.ne.s32.totalorder %s180, %s196
      %p198 = scmp.eq.s32.totalorder %s20, 0
      %p199 = por %p197, %p198
      %p200 = scmp.le.s32.totalorder 1, %s14
      %p201 = scmp.lt.s32.totalorder %s14, 3
      %p202 = pnand %p200, %p201
      %p203 = pneg %p202
      // Predicated region
      $region9: #{trans_encoder_layer_forward.2} parent=5 // pred_check
        _
      $region10: #{trans_encoder_layer_forward.2} parent=5 // pred_check_branch
        %205 = sbr.rel (%p202) target = $region12
      $region11: #{trans_encoder_layer_forward.2} parent=5 // pred_region
        %s206 = ssub.s32 %s14, 1
        // Predicated region
        $region13: #{trans_encoder_layer_forward.2} parent=11 // pred_check
          %p207 = pneg %p61
        $region14: #{trans_encoder_layer_forward.2} parent=11 // pred_check_branch
          %209 = sbr.rel (%p207) target = $region16
        $region15: #{trans_encoder_layer_forward.2} parent=11 // pred_region
          _
        $region16: #{trans_encoder_layer_forward.2} parent=11 // pred_fallthru
          _
        // Predicated region
        $region17: #{trans_encoder_layer_forward.2} parent=11 // pred_check
          %p210 = pneg %p82
        $region18: #{trans_encoder_layer_forward.2} parent=11 // pred_check_branch
          %212 = sbr.rel (%p210) target = $region20
        $region19: #{trans_encoder_layer_forward.2} parent=11 // pred_region
          _
        $region20: #{trans_encoder_layer_forward.2} parent=11 // pred_fallthru
          _
        // Predicated region
        $region21: #{trans_encoder_layer_forward.2} parent=11 // pred_check
          %p213 = pneg %p103
        $region22: #{trans_encoder_layer_forward.2} parent=11 // pred_check_branch
          %215 = sbr.rel (%p213) target = $region24
        $region23: #{trans_encoder_layer_forward.2} parent=11 // pred_region
          %s217 = ssub.s32 512, 512
          %218 = vsyncadd [#allocation3], %s217
          %s219 = sshll.u32 [#allocation2], 4
          %s220 = int_to_ptr.vmem [resolvable:$true] %s219
          %225 = dma.hbm_to_vmem [thread:$0]  %s3, 512, %s220, [#allocation3], 128, 128, 8
        $region24: #{trans_encoder_layer_forward.2} parent=11 // pred_fallthru
          _
        // Predicated region
        $region25: #{trans_encoder_layer_forward.2} parent=11 // pred_check
          %p226 = pneg %p124
        $region26: #{trans_encoder_layer_forward.2} parent=11 // pred_check_branch
          %228 = sbr.rel (%p226) target = $region28
        $region27: #{trans_encoder_layer_forward.2} parent=11 // pred_region
          _
        $region28: #{trans_encoder_layer_forward.2} parent=11 // pred_fallthru
          _
        // Predicated region
        $region29: #{trans_encoder_layer_forward.2} parent=11 // pred_check
          %p229 = pneg %p145
        $region30: #{trans_encoder_layer_forward.2} parent=11 // pred_check_branch
          %231 = sbr.rel (%p229) target = $region32
        $region31: #{trans_encoder_layer_forward.2} parent=11 // pred_region
          _
        $region32: #{trans_encoder_layer_forward.2} parent=11 // pred_fallthru
          _
        // Predicated region
        $region33: #{trans_encoder_layer_forward.2} parent=11 // pred_check
          %p232 = pneg %p166
        $region34: #{trans_encoder_layer_forward.2} parent=11 // pred_check_branch
          %234 = sbr.rel (%p232) target = $region36
        $region35: #{trans_encoder_layer_forward.2} parent=11 // pred_region
          _
        $region36: #{trans_encoder_layer_forward.2} parent=11 // pred_fallthru
          _
      $region12: #{trans_encoder_layer_forward.2} parent=5 // pred_fallthru
        _
      %p235 = scmp.lt.s32.totalorder %s14, 2
      // Predicated region
      $region37: #{trans_encoder_layer_forward.2} parent=5 // pred_check
        %p236 = pneg %p235
      $region38: #{trans_encoder_layer_forward.2} parent=5 // pred_check_branch
        %238 = sbr.rel (%p236) target = $region40
      $region39: #{trans_encoder_layer_forward.2} parent=5 // pred_region
        // Predicated region
        $region41: #{trans_encoder_layer_forward.2} parent=39 // pred_check
          %p239 = pneg %p34
        $region42: #{trans_encoder_layer_forward.2} parent=39 // pred_check_branch
          %241 = sbr.rel (%p239) target = $region44
        $region43: #{trans_encoder_layer_forward.2} parent=39 // pred_region
          %p242 = scmp.lt.s32.totalorder %s14, 1
          %s243 = scalar_select %p242, %s14, 1
          %s244 = smul.addr %s243, 8
          %s245 = scalar_lea.vmem %s0, %s244
        $region44: #{trans_encoder_layer_forward.2} parent=39 // pred_fallthru
          _
      $region40: #{trans_encoder_layer_forward.2} parent=5 // pred_fallthru
        _
      %p246 = scmp.le.s32.totalorder 1, %s14
      %p247 = scmp.lt.s32.totalorder %s14, 3
      %p248 = pnand %p246, %p247
      %p249 = pneg %p248
      // Predicated region
      $region45: #{trans_encoder_layer_forward.2} parent=5 // pred_check
        _
      $region46: #{trans_encoder_layer_forward.2} parent=5 // pred_check_branch
        %251 = sbr.rel (%p248) target = $region48
      $region47: #{trans_encoder_layer_forward.2} parent=5 // pred_region
        %s252 = ssub.s32 %s14, 1
        // Predicated region
        $region49: #{trans_encoder_layer_forward.2} parent=47 // pred_check
          %p253 = pneg %p103
        $region50: #{trans_encoder_layer_forward.2} parent=47 // pred_check_branch
          %255 = sbr.rel (%p253) target = $region52
        $region51: #{trans_encoder_layer_forward.2} parent=47 // pred_region
          %256 = dma.done [#allocation3], 512
        $region52: #{trans_encoder_layer_forward.2} parent=47 // pred_fallthru
          _
        %p257 = scmp.lt.s32.totalorder %s19, 1
        %s258 = scalar_select %p257, %s19, 1
        %s259 = smul.addr %s258, 8
        %s260 = scalar_lea.vmem %s0, %s259
        %p261 = pneg %p40
        %p262 = pneg %p37
        %p263 = pneg %p61
        %p264 = pneg %p58
        %p265 = pneg %p82
        %p266 = pneg %p79
        %p267 = pneg %p103
        %p268 = pneg %p100
        %p269 = pneg %p124
        %p270 = pneg %p121
        %p271 = pneg %p145
        %p272 = pneg %p142
        %p273 = pneg %p166
        %p274 = pneg %p163
        %p275 = pneg %p192
        %p276 = pneg %p189
        %p277 = scmp.lt.s32.totalorder %s19, 1
        %s278 = scalar_select %p277, %s19, 1
        %s279 = smul.addr %s278, 8
        %s280 = scalar_lea.vmem %s7, %s279
        %p281 = scmp.lt.s32.totalorder %s19, 1
        %s282 = scalar_select %p281, %s19, 1
        %s283 = smul.addr %s282, 8
        %s284 = scalar_lea.vmem %s0, %s283
        %p285 = scmp.lt.s32.totalorder %s19, 1
        %s286 = scalar_select %p285, %s19, 1
        %s287 = smul.addr %s286, 8
        %s288 = scalar_lea.vmem %s7, %s287
        %v289 = vld [vmem:[%s284] sm:$0xff]
        %v290 = vld [vmem:[%s1] sm:$0xff]
        %v291 = vld [vmem:[%s1 + $0x8] sm:$0xff]
        %v292 = vld [vmem:[%s1 + $0x10] sm:$0xff]
        %v293 = vld [vmem:[%s1 + $0x18] sm:$0xff]
        %v294 = vld [vmem:[%s2] sm:$0x1]
        %v296 = vlaneseq
        %v297 = vshrl.u32 %v296, 7
        %v298 = vsub.s32 0, %v297
        %v299 = vrot.slane %v294, %v298
        %vm301 = vcmask 261120
        %v303 = vsel %vm301, %v289, 0
        %305 = vmatprep.subr.mxu0 0.0
        %306 = vmatpush1.msra.mxu0 0.0
        %307 = vmatprep.subr.mxu0 0.0
        %308 = vmatpush1.msra.mxu0 0.0
        %309 = vmatprep.subr.mxu0 0.0
        %310 = vmatpush1.msra.mxu0 0.0
        %311 = vmatprep.subr.mxu0 0.0
        %312 = vmatpush1.msra.mxu0 0.0
        %313 = vmatprep.subr.mxu0 0.0
        %314 = vmatpush1.msra.mxu0 0.0
        %315 = vmatprep.subr.mxu0 0.0
        %316 = vmatpush1.msra.mxu0 0.0
        %317 = vmatprep.subr.mxu0 0.0
        %318 = vmatpush1.msra.mxu0 0.0
        %319 = vmatprep.subr.mxu0 0.0
        %320 = vmatpush1.msra.mxu0 0.0
        %321 = vmatprep.subr.mxu0 0.0
        %322 = vmatpush1.msra.mxu0 0.0
        %323 = vmatprep.subr.mxu0 0.0
        %324 = vmatpush1.msra.mxu0 0.0
        %325 = vmatprep.subr.mxu0 0.0
        %326 = vmatpush1.msra.mxu0 0.0
        %327 = vmatprep.subr.mxu0 0.0
        %328 = vmatpush1.msra.mxu0 0.0
        %329 = vmatprep.subr.mxu0 0.0
        %330 = vmatpush1.msra.mxu0 %v293
        %331 = vmatprep.subr.mxu0 0.0
        %332 = vmatpush1.msra.mxu0 %v292
        %333 = vmatprep.subr.mxu0 0.0
        %334 = vmatpush1.msra.mxu0 %v291
        %335 = vmatprep.subr.mxu0 0.0
        %336 = vmatpush1.msra.mxu0 %v290
        %337 = vmatprep.subr.mxu0 0.0
        %338 = vmatpush2.msra.mxu0 0.0
        %339 = vmatprep.subr.mxu0 0.0
        %340 = vmatpush2.msra.mxu0 0.0
        %341 = vmatprep.subr.mxu0 0.0
        %342 = vmatpush2.msra.mxu0 0.0
        %343 = vmatprep.subr.mxu0 0.0
        %344 = vmatpush2.msra.mxu0 0.0
        %345 = vmatprep.subr.mxu0 0.0
        %346 = vmatpush2.msra.mxu0 0.0
        %347 = vmatprep.subr.mxu0 0.0
        %348 = vmatpush2.msra.mxu0 0.0
        %349 = vmatprep.subr.mxu0 0.0
        %350 = vmatpush2.msra.mxu0 0.0
        %351 = vmatprep.subr.mxu0 0.0
        %352 = vmatpush2.msra.mxu0 0.0
        %353 = vmatprep.subr.mxu0 0.0
        %354 = vmatpush2.msra.mxu0 0.0
        %355 = vmatprep.subr.mxu0 0.0
        %356 = vmatpush2.msra.mxu0 0.0
        %357 = vmatprep.subr.mxu0 0.0
        %358 = vmatpush2.msra.mxu0 0.0
        %359 = vmatprep.subr.mxu0 0.0
        %360 = vmatpush2.msra.mxu0 0.0
        %361 = vmatprep.subr.mxu0 0.0
        %362 = vmatpush2.msra.mxu0 0.0
        %363 = vmatprep.subr.mxu0 0.0
        %364 = vmatpush2.msra.mxu0 0.0
        %365 = vmatprep.subr.mxu0 0.0
        %366 = vmatpush2.msra.mxu0 0.0
        %367 = vmatprep.subr.mxu0 0.0
        %368 = vmatpush2.msra.mxu0 0.0
        %369 = vmatprep.mubr.f32.mxu0 0.0
        %370 = vmatmul.mubr.f32.gmra.mxu0 %v303
        %v371 = vpop.f32.mrf.mxu0
        %v372 = vadd.f32 %v299, %v371
        %v373 = vpop.f32.mrf.mxu0
        %374 = vdwg.mxu0
        %376 = vrot.lane.b32.xlu0 %v372, 120
        %v377 = vpop.permute.xlu0 %376
        %378 = vrot.lane.b32.xlu0 %v372, 112
        %v379 = vpop.permute.xlu0 %378
        %380 = vrot.lane.b32.xlu0 %v372, 104
        %v381 = vpop.permute.xlu0 %380
        %382 = vrot.lane.b32.xlu0 %v372, 96
        %v383 = vpop.permute.xlu0 %382
        %vm384 = vcmask 64512
        %v385 = vsel %vm384, %v372, 0
        %v387 = vsel %vm384, %v383, 0
        %389 = vmatprep.subr.mxu0 0.0
        %390 = vmatpush1.xpose.msra.mxu0 0.0
        %391 = vmatprep.subr.mxu0 0.0
        %392 = vmatpush1.xpose.msra.mxu0 0.0
        %393 = vmatprep.subr.mxu0 0.0
        %394 = vmatpush1.xpose.msra.mxu0 0.0
        %395 = vmatprep.subr.mxu0 0.0
        %396 = vmatpush1.xpose.msra.mxu0 0.0
        %397 = vmatprep.subr.mxu0 0.0
        %398 = vmatpush1.xpose.msra.mxu0 0.0
        %399 = vmatprep.subr.mxu0 0.0
        %400 = vmatpush1.xpose.msra.mxu0 0.0
        %401 = vmatprep.subr.mxu0 0.0
        %402 = vmatpush1.xpose.msra.mxu0 0.0
        %403 = vmatprep.subr.mxu0 0.0
        %404 = vmatpush1.xpose.msra.mxu0 0.0
        %405 = vmatprep.subr.mxu0 0.0
        %406 = vmatpush1.xpose.msra.mxu0 0.0
        %407 = vmatprep.subr.mxu0 0.0
        %408 = vmatpush1.xpose.msra.mxu0 0.0
        %409 = vmatprep.subr.mxu0 0.0
        %410 = vmatpush1.xpose.msra.mxu0 0.0
        %411 = vmatprep.subr.mxu0 0.0
        %412 = vmatpush1.xpose.msra.mxu0 0.0
        %413 = vmatprep.subr.mxu0 0.0
        %414 = vmatpush1.xpose.msra.mxu0 0.0
        %415 = vmatprep.subr.mxu0 0.0
        %416 = vmatpush1.xpose.msra.mxu0 0.0
        %417 = vmatprep.subr.mxu0 0.0
        %418 = vmatpush1.xpose.msra.mxu0 0.0
        %419 = vmatprep.subr.mxu0 0.0
        %420 = vmatpush1.xpose.msra.mxu0 %v387
        %421 = vmatprep.subr.mxu0 0.0
        %422 = vmatpush2.xpose.msra.mxu0 0.0
        %423 = vmatprep.subr.mxu0 0.0
        %424 = vmatpush2.xpose.msra.mxu0 0.0
        %425 = vmatprep.subr.mxu0 0.0
        %426 = vmatpush2.xpose.msra.mxu0 0.0
        %427 = vmatprep.subr.mxu0 0.0
        %428 = vmatpush2.xpose.msra.mxu0 0.0
        %429 = vmatprep.subr.mxu0 0.0
        %430 = vmatpush2.xpose.msra.mxu0 0.0
        %431 = vmatprep.subr.mxu0 0.0
        %432 = vmatpush2.xpose.msra.mxu0 0.0
        %433 = vmatprep.subr.mxu0 0.0
        %434 = vmatpush2.xpose.msra.mxu0 0.0
        %435 = vmatprep.subr.mxu0 0.0
        %436 = vmatpush2.xpose.msra.mxu0 0.0
        %437 = vmatprep.subr.mxu0 0.0
        %438 = vmatpush2.xpose.msra.mxu0 0.0
        %439 = vmatprep.subr.mxu0 0.0
        %440 = vmatpush2.xpose.msra.mxu0 0.0
        %441 = vmatprep.subr.mxu0 0.0
        %442 = vmatpush2.xpose.msra.mxu0 0.0
        %443 = vmatprep.subr.mxu0 0.0
        %444 = vmatpush2.xpose.msra.mxu0 0.0
        %445 = vmatprep.subr.mxu0 0.0
        %446 = vmatpush2.xpose.msra.mxu0 0.0
        %447 = vmatprep.subr.mxu0 0.0
        %448 = vmatpush2.xpose.msra.mxu0 0.0
        %449 = vmatprep.subr.mxu0 0.0
        %450 = vmatpush2.xpose.msra.mxu0 0.0
        %451 = vmatprep.subr.mxu0 0.0
        %452 = vmatpush2.xpose.msra.mxu0 0.0
        %453 = vmatprep.mubr.f32.mxu0 0.0
        %454 = vmatmul.mubr.f32.gmra.mxu0 %v385
        %v455 = vpop.f32.mrf.mxu0
        %v456 = vadd.f32 0.0, %v455
        %v457 = vpop.f32.mrf.mxu0
        %458 = vdwg.mxu0
        %459 = vrot.lane.b32.xlu0 %v377, 96
        %v460 = vpop.permute.xlu0 %459
        %v461 = vsel %vm384, %v377, 0
        %v463 = vsel %vm384, %v460, 0
        %465 = vmatprep.subr.mxu0 0.0
        %466 = vmatpush1.xpose.msra.mxu0 0.0
        %467 = vmatprep.subr.mxu0 0.0
        %468 = vmatpush1.xpose.msra.mxu0 0.0
        %469 = vmatprep.subr.mxu0 0.0
        %470 = vmatpush1.xpose.msra.mxu0 0.0
        %471 = vmatprep.subr.mxu0 0.0
        %472 = vmatpush1.xpose.msra.mxu0 0.0
        %473 = vmatprep.subr.mxu0 0.0
        %474 = vmatpush1.xpose.msra.mxu0 0.0
        %475 = vmatprep.subr.mxu0 0.0
        %476 = vmatpush1.xpose.msra.mxu0 0.0
        %477 = vmatprep.subr.mxu0 0.0
        %478 = vmatpush1.xpose.msra.mxu0 0.0
        %479 = vmatprep.subr.mxu0 0.0
        %480 = vmatpush1.xpose.msra.mxu0 0.0
        %481 = vmatprep.subr.mxu0 0.0
        %482 = vmatpush1.xpose.msra.mxu0 0.0
        %483 = vmatprep.subr.mxu0 0.0
        %484 = vmatpush1.xpose.msra.mxu0 0.0
        %485 = vmatprep.subr.mxu0 0.0
        %486 = vmatpush1.xpose.msra.mxu0 0.0
        %487 = vmatprep.subr.mxu0 0.0
        %488 = vmatpush1.xpose.msra.mxu0 0.0
        %489 = vmatprep.subr.mxu0 0.0
        %490 = vmatpush1.xpose.msra.mxu0 0.0
        %491 = vmatprep.subr.mxu0 0.0
        %492 = vmatpush1.xpose.msra.mxu0 0.0
        %493 = vmatprep.subr.mxu0 0.0
        %494 = vmatpush1.xpose.msra.mxu0 0.0
        %495 = vmatprep.subr.mxu0 0.0
        %496 = vmatpush1.xpose.msra.mxu0 %v463
        %497 = vmatprep.subr.mxu0 0.0
        %498 = vmatpush2.xpose.msra.mxu0 0.0
        %499 = vmatprep.subr.mxu0 0.0
        %500 = vmatpush2.xpose.msra.mxu0 0.0
        %501 = vmatprep.subr.mxu0 0.0
        %502 = vmatpush2.xpose.msra.mxu0 0.0
        %503 = vmatprep.subr.mxu0 0.0
        %504 = vmatpush2.xpose.msra.mxu0 0.0
        %505 = vmatprep.subr.mxu0 0.0
        %506 = vmatpush2.xpose.msra.mxu0 0.0
        %507 = vmatprep.subr.mxu0 0.0
        %508 = vmatpush2.xpose.msra.mxu0 0.0
        %509 = vmatprep.subr.mxu0 0.0
        %510 = vmatpush2.xpose.msra.mxu0 0.0
        %511 = vmatprep.subr.mxu0 0.0
        %512 = vmatpush2.xpose.msra.mxu0 0.0
        %513 = vmatprep.subr.mxu0 0.0
        %514 = vmatpush2.xpose.msra.mxu0 0.0
        %515 = vmatprep.subr.mxu0 0.0
        %516 = vmatpush2.xpose.msra.mxu0 0.0
        %517 = vmatprep.subr.mxu0 0.0
        %518 = vmatpush2.xpose.msra.mxu0 0.0
        %519 = vmatprep.subr.mxu0 0.0
        %520 = vmatpush2.xpose.msra.mxu0 0.0
        %521 = vmatprep.subr.mxu0 0.0
        %522 = vmatpush2.xpose.msra.mxu0 0.0
        %523 = vmatprep.subr.mxu0 0.0
        %524 = vmatpush2.xpose.msra.mxu0 0.0
        %525 = vmatprep.subr.mxu0 0.0
        %526 = vmatpush2.xpose.msra.mxu0 0.0
        %527 = vmatprep.subr.mxu0 0.0
        %528 = vmatpush2.xpose.msra.mxu0 0.0
        %529 = vmatprep.mubr.f32.mxu0 0.0
        %530 = vmatmul.mubr.f32.gmra.mxu0 %v461
        %v531 = vpop.f32.mrf.mxu0
        %v532 = vadd.f32 0.0, %v531
        %v533 = vpop.f32.mrf.mxu0
        %534 = vdwg.mxu0
        %535 = vrot.lane.b32.xlu0 %v379, 96
        %v536 = vpop.permute.xlu0 %535
        %v537 = vsel %vm384, %v379, 0
        %v539 = vsel %vm384, %v536, 0
        %541 = vmatprep.subr.mxu0 0.0
        %542 = vmatpush1.xpose.msra.mxu0 0.0
        %543 = vmatprep.subr.mxu0 0.0
        %544 = vmatpush1.xpose.msra.mxu0 0.0
        %545 = vmatprep.subr.mxu0 0.0
        %546 = vmatpush1.xpose.msra.mxu0 0.0
        %547 = vmatprep.subr.mxu0 0.0
        %548 = vmatpush1.xpose.msra.mxu0 0.0
        %549 = vmatprep.subr.mxu0 0.0
        %550 = vmatpush1.xpose.msra.mxu0 0.0
        %551 = vmatprep.subr.mxu0 0.0
        %552 = vmatpush1.xpose.msra.mxu0 0.0
        %553 = vmatprep.subr.mxu0 0.0
        %554 = vmatpush1.xpose.msra.mxu0 0.0
        %555 = vmatprep.subr.mxu0 0.0
        %556 = vmatpush1.xpose.msra.mxu0 0.0
        %557 = vmatprep.subr.mxu0 0.0
        %558 = vmatpush1.xpose.msra.mxu0 0.0
        %559 = vmatprep.subr.mxu0 0.0
        %560 = vmatpush1.xpose.msra.mxu0 0.0
        %561 = vmatprep.subr.mxu0 0.0
        %562 = vmatpush1.xpose.msra.mxu0 0.0
        %563 = vmatprep.subr.mxu0 0.0
        %564 = vmatpush1.xpose.msra.mxu0 0.0
        %565 = vmatprep.subr.mxu0 0.0
        %566 = vmatpush1.xpose.msra.mxu0 0.0
        %567 = vmatprep.subr.mxu0 0.0
        %568 = vmatpush1.xpose.msra.mxu0 0.0
        %569 = vmatprep.subr.mxu0 0.0
        %570 = vmatpush1.xpose.msra.mxu0 0.0
        %571 = vmatprep.subr.mxu0 0.0
        %572 = vmatpush1.xpose.msra.mxu0 %v539
        %573 = vmatprep.subr.mxu0 0.0
        %574 = vmatpush2.xpose.msra.mxu0 0.0
        %575 = vmatprep.subr.mxu0 0.0
        %576 = vmatpush2.xpose.msra.mxu0 0.0
        %577 = vmatprep.subr.mxu0 0.0
        %578 = vmatpush2.xpose.msra.mxu0 0.0
        %579 = vmatprep.subr.mxu0 0.0
        %580 = vmatpush2.xpose.msra.mxu0 0.0
        %581 = vmatprep.subr.mxu0 0.0
        %582 = vmatpush2.xpose.msra.mxu0 0.0
        %583 = vmatprep.subr.mxu0 0.0
        %584 = vmatpush2.xpose.msra.mxu0 0.0
        %585 = vmatprep.subr.mxu0 0.0
        %586 = vmatpush2.xpose.msra.mxu0 0.0
        %587 = vmatprep.subr.mxu0 0.0
        %588 = vmatpush2.xpose.msra.mxu0 0.0
        %589 = vmatprep.subr.mxu0 0.0
        %590 = vmatpush2.xpose.msra.mxu0 0.0
        %591 = vmatprep.subr.mxu0 0.0
        %592 = vmatpush2.xpose.msra.mxu0 0.0
        %593 = vmatprep.subr.mxu0 0.0
        %594 = vmatpush2.xpose.msra.mxu0 0.0
        %595 = vmatprep.subr.mxu0 0.0
        %596 = vmatpush2.xpose.msra.mxu0 0.0
        %597 = vmatprep.subr.mxu0 0.0
        %598 = vmatpush2.xpose.msra.mxu0 0.0
        %599 = vmatprep.subr.mxu0 0.0
        %600 = vmatpush2.xpose.msra.mxu0 0.0
        %601 = vmatprep.subr.mxu0 0.0
        %602 = vmatpush2.xpose.msra.mxu0 0.0
        %603 = vmatprep.subr.mxu0 0.0
        %604 = vmatpush2.xpose.msra.mxu0 0.0
        %605 = vmatprep.mubr.f32.mxu0 0.0
        %606 = vmatmul.mubr.f32.gmra.mxu0 %v537
        %v607 = vpop.f32.mrf.mxu0
        %v608 = vadd.f32 0.0, %v607
        %v609 = vpop.f32.mrf.mxu0
        %610 = vdwg.mxu0
        %611 = vrot.lane.b32.xlu0 %v381, 96
        %v612 = vpop.permute.xlu0 %611
        %v613 = vsel %vm384, %v381, 0
        %v615 = vsel %vm384, %v612, 0
        %617 = vmatprep.subr.mxu0 0.0
        %618 = vmatpush1.xpose.msra.mxu0 0.0
        %619 = vmatprep.subr.mxu0 0.0
        %620 = vmatpush1.xpose.msra.mxu0 0.0
        %621 = vmatprep.subr.mxu0 0.0
        %622 = vmatpush1.xpose.msra.mxu0 0.0
        %623 = vmatprep.subr.mxu0 0.0
        %624 = vmatpush1.xpose.msra.mxu0 0.0
        %625 = vmatprep.subr.mxu0 0.0
        %626 = vmatpush1.xpose.msra.mxu0 0.0
        %627 = vmatprep.subr.mxu0 0.0
        %628 = vmatpush1.xpose.msra.mxu0 0.0
        %629 = vmatprep.subr.mxu0 0.0
        %630 = vmatpush1.xpose.msra.mxu0 0.0
        %631 = vmatprep.subr.mxu0 0.0
        %632 = vmatpush1.xpose.msra.mxu0 0.0
        %633 = vmatprep.subr.mxu0 0.0
        %634 = vmatpush1.xpose.msra.mxu0 0.0
        %635 = vmatprep.subr.mxu0 0.0
        %636 = vmatpush1.xpose.msra.mxu0 0.0
        %637 = vmatprep.subr.mxu0 0.0
        %638 = vmatpush1.xpose.msra.mxu0 0.0
        %639 = vmatprep.subr.mxu0 0.0
        %640 = vmatpush1.xpose.msra.mxu0 0.0
        %641 = vmatprep.subr.mxu0 0.0
        %642 = vmatpush1.xpose.msra.mxu0 0.0
        %643 = vmatprep.subr.mxu0 0.0
        %644 = vmatpush1.xpose.msra.mxu0 0.0
        %645 = vmatprep.subr.mxu0 0.0
        %646 = vmatpush1.xpose.msra.mxu0 0.0
        %647 = vmatprep.subr.mxu0 0.0
        %648 = vmatpush1.xpose.msra.mxu0 %v615
        %649 = vmatprep.subr.mxu0 0.0
        %650 = vmatpush2.xpose.msra.mxu0 0.0
        %651 = vmatprep.subr.mxu0 0.0
        %652 = vmatpush2.xpose.msra.mxu0 0.0
        %653 = vmatprep.subr.mxu0 0.0
        %654 = vmatpush2.xpose.msra.mxu0 0.0
        %655 = vmatprep.subr.mxu0 0.0
        %656 = vmatpush2.xpose.msra.mxu0 0.0
        %657 = vmatprep.subr.mxu0 0.0
        %658 = vmatpush2.xpose.msra.mxu0 0.0
        %659 = vmatprep.subr.mxu0 0.0
        %660 = vmatpush2.xpose.msra.mxu0 0.0
        %661 = vmatprep.subr.mxu0 0.0
        %662 = vmatpush2.xpose.msra.mxu0 0.0
        %663 = vmatprep.subr.mxu0 0.0
        %664 = vmatpush2.xpose.msra.mxu0 0.0
        %665 = vmatprep.subr.mxu0 0.0
        %666 = vmatpush2.xpose.msra.mxu0 0.0
        %667 = vmatprep.subr.mxu0 0.0
        %668 = vmatpush2.xpose.msra.mxu0 0.0
        %669 = vmatprep.subr.mxu0 0.0
        %670 = vmatpush2.xpose.msra.mxu0 0.0
        %671 = vmatprep.subr.mxu0 0.0
        %672 = vmatpush2.xpose.msra.mxu0 0.0
        %673 = vmatprep.subr.mxu0 0.0
        %674 = vmatpush2.xpose.msra.mxu0 0.0
        %675 = vmatprep.subr.mxu0 0.0
        %676 = vmatpush2.xpose.msra.mxu0 0.0
        %677 = vmatprep.subr.mxu0 0.0
        %678 = vmatpush2.xpose.msra.mxu0 0.0
        %679 = vmatprep.subr.mxu0 0.0
        %680 = vmatpush2.xpose.msra.mxu0 0.0
        %681 = vmatprep.mubr.f32.mxu0 0.0
        %682 = vmatmul.mubr.f32.gmra.mxu0 %v613
        %v683 = vpop.f32.mrf.mxu0
        %v684 = vadd.f32 0.0, %v683
        %v685 = vpop.f32.mrf.mxu0
        %686 = vdwg.mxu0
        %v687 = vsel %vm384, %v456, -inf
        %688 = vmax.xlane.f32.xlu0 %v687
        %v689 = vpop.xlane.xlu0 %688
        %v690 = vsel %vm384, %v532, -inf
        %691 = vmax.xlane.f32.xlu0 %v690
        %v692 = vpop.xlane.xlu0 %691
        %v693 = vsel %vm384, %v608, -inf
        %694 = vmax.xlane.f32.xlu0 %v693
        %v695 = vpop.xlane.xlu0 %694
        %v696 = vsel %vm384, %v684, -inf
        %697 = vmax.xlane.f32.xlu0 %v696
        %v698 = vpop.xlane.xlu0 %697
        %v699 = vsub.f32 %v456, %v689
        %v700 = vsub.f32 %v532, %v692
        %v701 = vsub.f32 %v608, %v695
        %v702 = vsub.f32 %v684, %v698
        %v703 = vmul.f32 %v699, 1.442695
        %v704 = vpow.pop %v703
        %v705 = vmul.f32 %v700, 1.442695
        %v706 = vpow.pop %v705
        %v707 = vmul.f32 %v701, 1.442695
        %v708 = vpow.pop %v707
        %v709 = vmul.f32 %v702, 1.442695
        %v710 = vpow.pop %v709
        %v711 = vsel %vm384, %v704, 0.0
        %712 = vadd.xlane.f32.xlu0 %v711
        %v713 = vpop.xlane.xlu0 %712
        %v714 = vsel %vm384, %v706, 0.0
        %715 = vadd.xlane.f32.xlu0 %v714
        %v716 = vpop.xlane.xlu0 %715
        %v717 = vsel %vm384, %v708, 0.0
        %718 = vadd.xlane.f32.xlu0 %v717
        %v719 = vpop.xlane.xlu0 %718
        %v720 = vsel %vm384, %v710, 0.0
        %721 = vadd.xlane.f32.xlu0 %v720
        %v722 = vpop.xlane.xlu0 %721
        %v723 = vrcp.pop %v713
        %v724 = vrcp.pop %v716
        %v725 = vrcp.pop %v719
        %v726 = vrcp.pop %v722
        %v727 = vmul.f32 %v704, %v723
        %v728 = vmul.f32 %v706, %v724
        %v729 = vmul.f32 %v708, %v725
        %v730 = vmul.f32 %v710, %v726
        %731 = vrot.lane.b32.xlu0 %v372, 64
        %v732 = vpop.permute.xlu0 %731
        %v735 = vsel %vm384, %v727, 0
        %737 = vmatprep.subr.mxu0 0.0
        %738 = vmatpush1.msra.mxu0 0.0
        %739 = vmatprep.subr.mxu0 0.0
        %740 = vmatpush1.msra.mxu0 0.0
        %741 = vmatprep.subr.mxu0 0.0
        %742 = vmatpush1.msra.mxu0 0.0
        %743 = vmatprep.subr.mxu0 0.0
        %744 = vmatpush1.msra.mxu0 0.0
        %745 = vmatprep.subr.mxu0 0.0
        %746 = vmatpush1.msra.mxu0 0.0
        %747 = vmatprep.subr.mxu0 0.0
        %748 = vmatpush1.msra.mxu0 0.0
        %749 = vmatprep.subr.mxu0 0.0
        %750 = vmatpush1.msra.mxu0 0.0
        %751 = vmatprep.subr.mxu0 0.0
        %752 = vmatpush1.msra.mxu0 0.0
        %753 = vmatprep.subr.mxu0 0.0
        %754 = vmatpush1.msra.mxu0 0.0
        %755 = vmatprep.subr.mxu0 0.0
        %756 = vmatpush1.msra.mxu0 0.0
        %757 = vmatprep.subr.mxu0 0.0
        %758 = vmatpush1.msra.mxu0 0.0
        %759 = vmatprep.subr.mxu0 0.0
        %760 = vmatpush1.msra.mxu0 0.0
        %761 = vmatprep.subr.mxu0 0.0
        %762 = vmatpush1.msra.mxu0 0.0
        %763 = vmatprep.subr.mxu0 0.0
        %764 = vmatpush1.msra.mxu0 0.0
        %765 = vmatprep.subr.mxu0 0.0
        %766 = vmatpush1.msra.mxu0 0.0
        %767 = vmatprep.subr.mxu0 0.0
        %768 = vmatpush1.msra.mxu0 %v732
        %769 = vmatprep.subr.mxu0 0.0
        %770 = vmatpush2.msra.mxu0 0.0
        %771 = vmatprep.subr.mxu0 0.0
        %772 = vmatpush2.msra.mxu0 0.0
        %773 = vmatprep.subr.mxu0 0.0
        %774 = vmatpush2.msra.mxu0 0.0
        %775 = vmatprep.subr.mxu0 0.0
        %776 = vmatpush2.msra.mxu0 0.0
        %777 = vmatprep.subr.mxu0 0.0
        %778 = vmatpush2.msra.mxu0 0.0
        %779 = vmatprep.subr.mxu0 0.0
        %780 = vmatpush2.msra.mxu0 0.0
        %781 = vmatprep.subr.mxu0 0.0
        %782 = vmatpush2.msra.mxu0 0.0
        %783 = vmatprep.subr.mxu0 0.0
        %784 = vmatpush2.msra.mxu0 0.0
        %785 = vmatprep.subr.mxu0 0.0
        %786 = vmatpush2.msra.mxu0 0.0
        %787 = vmatprep.subr.mxu0 0.0
        %788 = vmatpush2.msra.mxu0 0.0
        %789 = vmatprep.subr.mxu0 0.0
        %790 = vmatpush2.msra.mxu0 0.0
        %791 = vmatprep.subr.mxu0 0.0
        %792 = vmatpush2.msra.mxu0 0.0
        %793 = vmatprep.subr.mxu0 0.0
        %794 = vmatpush2.msra.mxu0 0.0
        %795 = vmatprep.subr.mxu0 0.0
        %796 = vmatpush2.msra.mxu0 0.0
        %797 = vmatprep.subr.mxu0 0.0
        %798 = vmatpush2.msra.mxu0 0.0
        %799 = vmatprep.subr.mxu0 0.0
        %800 = vmatpush2.msra.mxu0 0.0
        %801 = vmatprep.mubr.f32.mxu0 0.0
        %802 = vmatmul.mubr.f32.gmra.mxu0 %v735
        %v803 = vpop.f32.mrf.mxu0
        %v804 = vadd.f32 0.0, %v803
        %v805 = vpop.f32.mrf.mxu0
        %806 = vdwg.mxu0
        %807 = vrot.lane.b32.xlu0 %v377, 64
        %v808 = vpop.permute.xlu0 %807
        %v811 = vsel %vm384, %v728, 0
        %813 = vmatprep.subr.mxu0 0.0
        %814 = vmatpush1.msra.mxu0 0.0
        %815 = vmatprep.subr.mxu0 0.0
        %816 = vmatpush1.msra.mxu0 0.0
        %817 = vmatprep.subr.mxu0 0.0
        %818 = vmatpush1.msra.mxu0 0.0
        %819 = vmatprep.subr.mxu0 0.0
        %820 = vmatpush1.msra.mxu0 0.0
        %821 = vmatprep.subr.mxu0 0.0
        %822 = vmatpush1.msra.mxu0 0.0
        %823 = vmatprep.subr.mxu0 0.0
        %824 = vmatpush1.msra.mxu0 0.0
        %825 = vmatprep.subr.mxu0 0.0
        %826 = vmatpush1.msra.mxu0 0.0
        %827 = vmatprep.subr.mxu0 0.0
        %828 = vmatpush1.msra.mxu0 0.0
        %829 = vmatprep.subr.mxu0 0.0
        %830 = vmatpush1.msra.mxu0 0.0
        %831 = vmatprep.subr.mxu0 0.0
        %832 = vmatpush1.msra.mxu0 0.0
        %833 = vmatprep.subr.mxu0 0.0
        %834 = vmatpush1.msra.mxu0 0.0
        %835 = vmatprep.subr.mxu0 0.0
        %836 = vmatpush1.msra.mxu0 0.0
        %837 = vmatprep.subr.mxu0 0.0
        %838 = vmatpush1.msra.mxu0 0.0
        %839 = vmatprep.subr.mxu0 0.0
        %840 = vmatpush1.msra.mxu0 0.0
        %841 = vmatprep.subr.mxu0 0.0
        %842 = vmatpush1.msra.mxu0 0.0
        %843 = vmatprep.subr.mxu0 0.0
        %844 = vmatpush1.msra.mxu0 %v808
        %845 = vmatprep.subr.mxu0 0.0
        %846 = vmatpush2.msra.mxu0 0.0
        %847 = vmatprep.subr.mxu0 0.0
        %848 = vmatpush2.msra.mxu0 0.0
        %849 = vmatprep.subr.mxu0 0.0
        %850 = vmatpush2.msra.mxu0 0.0
        %851 = vmatprep.subr.mxu0 0.0
        %852 = vmatpush2.msra.mxu0 0.0
        %853 = vmatprep.subr.mxu0 0.0
        %854 = vmatpush2.msra.mxu0 0.0
        %855 = vmatprep.subr.mxu0 0.0
        %856 = vmatpush2.msra.mxu0 0.0
        %857 = vmatprep.subr.mxu0 0.0
        %858 = vmatpush2.msra.mxu0 0.0
        %859 = vmatprep.subr.mxu0 0.0
        %860 = vmatpush2.msra.mxu0 0.0
        %861 = vmatprep.subr.mxu0 0.0
        %862 = vmatpush2.msra.mxu0 0.0
        %863 = vmatprep.subr.mxu0 0.0
        %864 = vmatpush2.msra.mxu0 0.0
        %865 = vmatprep.subr.mxu0 0.0
        %866 = vmatpush2.msra.mxu0 0.0
        %867 = vmatprep.subr.mxu0 0.0
        %868 = vmatpush2.msra.mxu0 0.0
        %869 = vmatprep.subr.mxu0 0.0
        %870 = vmatpush2.msra.mxu0 0.0
        %871 = vmatprep.subr.mxu0 0.0
        %872 = vmatpush2.msra.mxu0 0.0
        %873 = vmatprep.subr.mxu0 0.0
        %874 = vmatpush2.msra.mxu0 0.0
        %875 = vmatprep.subr.mxu0 0.0
        %876 = vmatpush2.msra.mxu0 0.0
        %877 = vmatprep.mubr.f32.mxu0 0.0
        %878 = vmatmul.mubr.f32.gmra.mxu0 %v811
        %v879 = vpop.f32.mrf.mxu0
        %v880 = vadd.f32 0.0, %v879
        %v881 = vpop.f32.mrf.mxu0
        %882 = vdwg.mxu0
        %883 = vrot.lane.b32.xlu0 %v379, 64
        %v884 = vpop.permute.xlu0 %883
        %v887 = vsel %vm384, %v729, 0
        %889 = vmatprep.subr.mxu0 0.0
        %890 = vmatpush1.msra.mxu0 0.0
        %891 = vmatprep.subr.mxu0 0.0
        %892 = vmatpush1.msra.mxu0 0.0
        %893 = vmatprep.subr.mxu0 0.0
        %894 = vmatpush1.msra.mxu0 0.0
        %895 = vmatprep.subr.mxu0 0.0
        %896 = vmatpush1.msra.mxu0 0.0
        %897 = vmatprep.subr.mxu0 0.0
        %898 = vmatpush1.msra.mxu0 0.0
        %899 = vmatprep.subr.mxu0 0.0
        %900 = vmatpush1.msra.mxu0 0.0
        %901 = vmatprep.subr.mxu0 0.0
        %902 = vmatpush1.msra.mxu0 0.0
        %903 = vmatprep.subr.mxu0 0.0
        %904 = vmatpush1.msra.mxu0 0.0
        %905 = vmatprep.subr.mxu0 0.0
        %906 = vmatpush1.msra.mxu0 0.0
        %907 = vmatprep.subr.mxu0 0.0
        %908 = vmatpush1.msra.mxu0 0.0
        %909 = vmatprep.subr.mxu0 0.0
        %910 = vmatpush1.msra.mxu0 0.0
        %911 = vmatprep.subr.mxu0 0.0
        %912 = vmatpush1.msra.mxu0 0.0
        %913 = vmatprep.subr.mxu0 0.0
        %914 = vmatpush1.msra.mxu0 0.0
        %915 = vmatprep.subr.mxu0 0.0
        %916 = vmatpush1.msra.mxu0 0.0
        %917 = vmatprep.subr.mxu0 0.0
        %918 = vmatpush1.msra.mxu0 0.0
        %919 = vmatprep.subr.mxu0 0.0
        %920 = vmatpush1.msra.mxu0 %v884
        %921 = vmatprep.subr.mxu0 0.0
        %922 = vmatpush2.msra.mxu0 0.0
        %923 = vmatprep.subr.mxu0 0.0
        %924 = vmatpush2.msra.mxu0 0.0
        %925 = vmatprep.subr.mxu0 0.0
        %926 = vmatpush2.msra.mxu0 0.0
        %927 = vmatprep.subr.mxu0 0.0
        %928 = vmatpush2.msra.mxu0 0.0
        %929 = vmatprep.subr.mxu0 0.0
        %930 = vmatpush2.msra.mxu0 0.0
        %931 = vmatprep.subr.mxu0 0.0
        %932 = vmatpush2.msra.mxu0 0.0
        %933 = vmatprep.subr.mxu0 0.0
        %934 = vmatpush2.msra.mxu0 0.0
        %935 = vmatprep.subr.mxu0 0.0
        %936 = vmatpush2.msra.mxu0 0.0
        %937 = vmatprep.subr.mxu0 0.0
        %938 = vmatpush2.msra.mxu0 0.0
        %939 = vmatprep.subr.mxu0 0.0
        %940 = vmatpush2.msra.mxu0 0.0
        %941 = vmatprep.subr.mxu0 0.0
        %942 = vmatpush2.msra.mxu0 0.0
        %943 = vmatprep.subr.mxu0 0.0
        %944 = vmatpush2.msra.mxu0 0.0
        %945 = vmatprep.subr.mxu0 0.0
        %946 = vmatpush2.msra.mxu0 0.0
        %947 = vmatprep.subr.mxu0 0.0
        %948 = vmatpush2.msra.mxu0 0.0
        %949 = vmatprep.subr.mxu0 0.0
        %950 = vmatpush2.msra.mxu0 0.0
        %951 = vmatprep.subr.mxu0 0.0
        %952 = vmatpush2.msra.mxu0 0.0
        %953 = vmatprep.mubr.f32.mxu0 0.0
        %954 = vmatmul.mubr.f32.gmra.mxu0 %v887
        %v955 = vpop.f32.mrf.mxu0
        %v956 = vadd.f32 0.0, %v955
        %v957 = vpop.f32.mrf.mxu0
        %958 = vdwg.mxu0
        %959 = vrot.lane.b32.xlu0 %v381, 64
        %v960 = vpop.permute.xlu0 %959
        %v963 = vsel %vm384, %v730, 0
        %965 = vmatprep.subr.mxu0 0.0
        %966 = vmatpush1.msra.mxu0 0.0
        %967 = vmatprep.subr.mxu0 0.0
        %968 = vmatpush1.msra.mxu0 0.0
        %969 = vmatprep.subr.mxu0 0.0
        %970 = vmatpush1.msra.mxu0 0.0
        %971 = vmatprep.subr.mxu0 0.0
        %972 = vmatpush1.msra.mxu0 0.0
        %973 = vmatprep.subr.mxu0 0.0
        %974 = vmatpush1.msra.mxu0 0.0
        %975 = vmatprep.subr.mxu0 0.0
        %976 = vmatpush1.msra.mxu0 0.0
        %977 = vmatprep.subr.mxu0 0.0
        %978 = vmatpush1.msra.mxu0 0.0
        %979 = vmatprep.subr.mxu0 0.0
        %980 = vmatpush1.msra.mxu0 0.0
        %981 = vmatprep.subr.mxu0 0.0
        %982 = vmatpush1.msra.mxu0 0.0
        %983 = vmatprep.subr.mxu0 0.0
        %984 = vmatpush1.msra.mxu0 0.0
        %985 = vmatprep.subr.mxu0 0.0
        %986 = vmatpush1.msra.mxu0 0.0
        %987 = vmatprep.subr.mxu0 0.0
        %988 = vmatpush1.msra.mxu0 0.0
        %989 = vmatprep.subr.mxu0 0.0
        %990 = vmatpush1.msra.mxu0 0.0
        %991 = vmatprep.subr.mxu0 0.0
        %992 = vmatpush1.msra.mxu0 0.0
        %993 = vmatprep.subr.mxu0 0.0
        %994 = vmatpush1.msra.mxu0 0.0
        %995 = vmatprep.subr.mxu0 0.0
        %996 = vmatpush1.msra.mxu0 %v960
        %997 = vmatprep.subr.mxu0 0.0
        %998 = vmatpush2.msra.mxu0 0.0
        %999 = vmatprep.subr.mxu0 0.0
        %1000 = vmatpush2.msra.mxu0 0.0
        %1001 = vmatprep.subr.mxu0 0.0
        %1002 = vmatpush2.msra.mxu0 0.0
        %1003 = vmatprep.subr.mxu0 0.0
        %1004 = vmatpush2.msra.mxu0 0.0
        %1005 = vmatprep.subr.mxu0 0.0
        %1006 = vmatpush2.msra.mxu0 0.0
        %1007 = vmatprep.subr.mxu0 0.0
        %1008 = vmatpush2.msra.mxu0 0.0
        %1009 = vmatprep.subr.mxu0 0.0
        %1010 = vmatpush2.msra.mxu0 0.0
        %1011 = vmatprep.subr.mxu0 0.0
        %1012 = vmatpush2.msra.mxu0 0.0
        %1013 = vmatprep.subr.mxu0 0.0
        %1014 = vmatpush2.msra.mxu0 0.0
        %1015 = vmatprep.subr.mxu0 0.0
        %1016 = vmatpush2.msra.mxu0 0.0
        %1017 = vmatprep.subr.mxu0 0.0
        %1018 = vmatpush2.msra.mxu0 0.0
        %1019 = vmatprep.subr.mxu0 0.0
        %1020 = vmatpush2.msra.mxu0 0.0
        %1021 = vmatprep.subr.mxu0 0.0
        %1022 = vmatpush2.msra.mxu0 0.0
        %1023 = vmatprep.subr.mxu0 0.0
        %1024 = vmatpush2.msra.mxu0 0.0
        %1025 = vmatprep.subr.mxu0 0.0
        %1026 = vmatpush2.msra.mxu0 0.0
        %1027 = vmatprep.subr.mxu0 0.0
        %1028 = vmatpush2.msra.mxu0 0.0
        %1029 = vmatprep.mubr.f32.mxu0 0.0
        %1030 = vmatmul.mubr.f32.gmra.mxu0 %v963
        %v1031 = vpop.f32.mrf.mxu0
        %v1032 = vadd.f32 0.0, %v1031
        %v1033 = vpop.f32.mrf.mxu0
        %1034 = vdwg.mxu0
        %1036 = vrot.lane.b32.xlu0 %v880, 8
        %v1037 = vpop.permute.xlu0 %1036
        %1040 = vrot.lane.b32.xlu0 %v956, 16
        %v1041 = vpop.permute.xlu0 %1040
        %1044 = vrot.lane.b32.xlu0 %v1032, 24
        %v1045 = vpop.permute.xlu0 %1044
        %v1047 = vsel %vm384, %v804, %v1037
        %vm1048 = vcmask 130048
        %v1049 = vsel %vm1048, %v1047, %v1041
        %vm1050 = vcmask 195584
        %v1051 = vsel %vm1050, %v1049, %v1045
        %v1052 = vld [vmem:[#allocation2] sm:$0xff]
        %v1053 = vld [vmem:[#allocation2 + $0x8] sm:$0xff]
        %v1054 = vld [vmem:[#allocation2 + $0x10] sm:$0xff]
        %v1055 = vld [vmem:[#allocation2 + $0x18] sm:$0xff]
        %v1056 = vld [vmem:[%s4] sm:$0x1]
        %v1058 = vlaneseq
        %v1059 = vshrl.u32 %v1058, 7
        %v1060 = vsub.s32 0, %v1059
        %v1061 = vrot.slane %v1056, %v1060
        %v1064 = vsel %vm301, %v1051, 0
        %1066 = vmatprep.subr.mxu0 0.0
        %1067 = vmatpush1.msra.mxu0 0.0
        %1068 = vmatprep.subr.mxu0 0.0
        %1069 = vmatpush1.msra.mxu0 0.0
        %1070 = vmatprep.subr.mxu0 0.0
        %1071 = vmatpush1.msra.mxu0 0.0
        %1072 = vmatprep.subr.mxu0 0.0
        %1073 = vmatpush1.msra.mxu0 0.0
        %1074 = vmatprep.subr.mxu0 0.0
        %1075 = vmatpush1.msra.mxu0 0.0
        %1076 = vmatprep.subr.mxu0 0.0
        %1077 = vmatpush1.msra.mxu0 0.0
        %1078 = vmatprep.subr.mxu0 0.0
        %1079 = vmatpush1.msra.mxu0 0.0
        %1080 = vmatprep.subr.mxu0 0.0
        %1081 = vmatpush1.msra.mxu0 0.0
        %1082 = vmatprep.subr.mxu0 0.0
        %1083 = vmatpush1.msra.mxu0 0.0
        %1084 = vmatprep.subr.mxu0 0.0
        %1085 = vmatpush1.msra.mxu0 0.0
        %1086 = vmatprep.subr.mxu0 0.0
        %1087 = vmatpush1.msra.mxu0 0.0
        %1088 = vmatprep.subr.mxu0 0.0
        %1089 = vmatpush1.msra.mxu0 0.0
        %1090 = vmatprep.subr.mxu0 0.0
        %1091 = vmatpush1.msra.mxu0 %v1055
        %1092 = vmatprep.subr.mxu0 0.0
        %1093 = vmatpush1.msra.mxu0 %v1054
        %1094 = vmatprep.subr.mxu0 0.0
        %1095 = vmatpush1.msra.mxu0 %v1053
        %1096 = vmatprep.subr.mxu0 0.0
        %1097 = vmatpush1.msra.mxu0 %v1052
        %1098 = vmatprep.subr.mxu0 0.0
        %1099 = vmatpush2.msra.mxu0 0.0
        %1100 = vmatprep.subr.mxu0 0.0
        %1101 = vmatpush2.msra.mxu0 0.0
        %1102 = vmatprep.subr.mxu0 0.0
        %1103 = vmatpush2.msra.mxu0 0.0
        %1104 = vmatprep.subr.mxu0 0.0
        %1105 = vmatpush2.msra.mxu0 0.0
        %1106 = vmatprep.subr.mxu0 0.0
        %1107 = vmatpush2.msra.mxu0 0.0
        %1108 = vmatprep.subr.mxu0 0.0
        %1109 = vmatpush2.msra.mxu0 0.0
        %1110 = vmatprep.subr.mxu0 0.0
        %1111 = vmatpush2.msra.mxu0 0.0
        %1112 = vmatprep.subr.mxu0 0.0
        %1113 = vmatpush2.msra.mxu0 0.0
        %1114 = vmatprep.subr.mxu0 0.0
        %1115 = vmatpush2.msra.mxu0 0.0
        %1116 = vmatprep.subr.mxu0 0.0
        %1117 = vmatpush2.msra.mxu0 0.0
        %1118 = vmatprep.subr.mxu0 0.0
        %1119 = vmatpush2.msra.mxu0 0.0
        %1120 = vmatprep.subr.mxu0 0.0
        %1121 = vmatpush2.msra.mxu0 0.0
        %1122 = vmatprep.subr.mxu0 0.0
        %1123 = vmatpush2.msra.mxu0 0.0
        %1124 = vmatprep.subr.mxu0 0.0
        %1125 = vmatpush2.msra.mxu0 0.0
        %1126 = vmatprep.subr.mxu0 0.0
        %1127 = vmatpush2.msra.mxu0 0.0
        %1128 = vmatprep.subr.mxu0 0.0
        %1129 = vmatpush2.msra.mxu0 0.0
        %1130 = vmatprep.mubr.f32.mxu0 0.0
        %1131 = vmatmul.mubr.f32.gmra.mxu0 %v1064
        %v1132 = vpop.f32.mrf.mxu0
        %v1133 = vadd.f32 %v1061, %v1132
        %v1134 = vpop.f32.mrf.mxu0
        %1135 = vdwg.mxu0
        %v1136 = vadd.f32 %v289, %v1133
        %v1137 = vsel %vm301, %v1136, 0.0
        %1138 = vadd.xlane.f32.xlu0 %v1137
        %v1139 = vpop.xlane.xlu0 %1138
        %v1140 = vrcp.pop 32.0
        %v1141 = vmul.f32 %v1139, %v1140
        %v1142 = vsub.f32 %v1136, %v1141
        %v1143 = vmul.f32 %v1142, %v1142
        %v1144 = vsel %vm301, %v1143, 0.0
        %1145 = vadd.xlane.f32.xlu0 %v1144
        %v1146 = vpop.xlane.xlu0 %1145
        %v1147 = vmul.f32 %v1146, %v1140
        %v1148 = vadd.f32 %v1147, 1e-05
        %v1149 = vrsqrt.pop %v1148
        %v1150 = vmul.f32 %v1142, %v1149
        %v1151 = vld [vmem:[%s5] sm:$0x1]
        %v1153 = vlaneseq
        %v1154 = vshrl.u32 %v1153, 7
        %v1155 = vsub.s32 0, %v1154
        %v1156 = vrot.slane %v1151, %v1155
        %v1158 = vmul.f32 %v1150, %v1156
        %v1159 = vld [vmem:[%s6] sm:$0x1]
        %v1161 = vlaneseq
        %v1162 = vshrl.u32 %v1161, 7
        %v1163 = vsub.s32 0, %v1162
        %v1164 = vrot.slane %v1159, %v1163
        %v1166 = vadd.f32 %v1158, %v1164
        %1167 = vst.msk [vmem:[%s288] sm:$0xff] %vm301, %v1166
        %p1168 = scmp.lt.s32.totalorder %s19, 1
        %s1169 = scalar_select %p1168, %s19, 1
        %s1170 = smul.addr %s1169, 8
        %s1171 = scalar_lea.vmem %s7, %s1170
        // Predicated region
        $region53: #{trans_encoder_layer_forward.2} parent=47 // pred_check
          %p1172 = pneg %p189
        $region54: #{trans_encoder_layer_forward.2} parent=47 // pred_check_branch
          %1174 = sbr.rel (%p1172) target = $region56
        $region55: #{trans_encoder_layer_forward.2} parent=47 // pred_region
          _
        $region56: #{trans_encoder_layer_forward.2} parent=47 // pred_fallthru
          _
      $region48: #{trans_encoder_layer_forward.2} parent=5 // pred_fallthru
        _
      %p1175 = scmp.le.s32.totalorder 2, %s14
      // Predicated region
      $region57: #{trans_encoder_layer_forward.2} parent=5 // pred_check
        %p1176 = pneg %p1175
      $region58: #{trans_encoder_layer_forward.2} parent=5 // pred_check_branch
        %1178 = sbr.rel (%p1176) target = $region60
      $region59: #{trans_encoder_layer_forward.2} parent=5 // pred_region
        %s1179 = ssub.s32 %s14, 2
        // Predicated region
        $region61: #{trans_encoder_layer_forward.2} parent=59 // pred_check
          %p1180 = pneg %p195
        $region62: #{trans_encoder_layer_forward.2} parent=59 // pred_check_branch
          %1182 = sbr.rel (%p1180) target = $region64
        $region63: #{trans_encoder_layer_forward.2} parent=59 // pred_region
          %p1183 = scmp.lt.s32.totalorder %s20, 1
          %s1184 = scalar_select %p1183, %s20, 1
          %s1185 = smul.addr %s1184, 8
          %s1186 = scalar_lea.vmem %s7, %s1185
        $region64: #{trans_encoder_layer_forward.2} parent=59 // pred_fallthru
          _
      $region60: #{trans_encoder_layer_forward.2} parent=5 // pred_fallthru
        _
    $region6: #{trans_encoder_layer_forward.2} parent=1 // loop_footer
      %s18 = sadd.s32 1, %s14
    $region7: #{trans_encoder_layer_forward.2} parent=1 // loop_footer_branch
      %13 = sbr.rel target = $region3
    $region8: #{trans_encoder_layer_forward.2} parent=1 // loop_exit
      _
    %1187 = vsyncpa [#allocation3], 1
    %s1188 = scalar_lea.sflag [#allocation3], 1
    %1189 = vsyncpa %s1188, 1

</llo_original>
